<compile_context>
chip_gen: v7x
topology: tpu7x:2x2x1
jax: 0.10.0
libtpu: 0.0.40
codegen_flags: <defaults>
</compile_context>

<pallas_src>
import jax
import jax.numpy as jnp
from jax.experimental import pallas as pl
from jax.experimental.pallas import tpu as pltpu


# ----------------------------- Pallas kernel ------------------------------ #
def _downsample_kernel(e0e_ref, e0o_ref, o1e_ref, o1o_ref, e2e_ref, e2o_ref,
                       w_ref, out_ref):
    """One grid step: a (tho x Wo) stripe of output pixels, all output channels.

    Input refs hold stride-2 phase slabs of the zero-padded NHWC input:
      e0e / o1e / e2e : (1, tho, Wo + 1, Cin)  rows 2r+kh, even padded columns
      e0o / o1o / e2o : (1, tho, Wo,     Cin)  rows 2r+kh, odd padded columns
    w_ref   : (3, 3, Cin, Cout_p) conv weight, tap-major.
    out_ref : (1, tho, Wo, Cout_p) float32.
    """
    _, tho, wop1, cin = e0e_ref.shape
    wo = wop1 - 1
    coutp = w_ref.shape[-1]
    m = tho * wo

    def tap(x, kh, kw):
        # x: (tho, wo, cin) -> contract cin against the (cin, coutp) tap weight.
        return jnp.dot(x.reshape(m, cin), w_ref[kh, kw],
                       preferred_element_type=jnp.float32)

    e0e = e0e_ref[0]
    o1e = o1e_ref[0]
    e2e = e2e_ref[0]

    acc = tap(e0e[:, :wo, :], 0, 0)            # (kh=0, kw=0)
    acc = acc + tap(e0o_ref[0], 0, 1)          # (0, 1)
    acc = acc + tap(e0e[:, 1:, :], 0, 2)       # (0, 2)
    acc = acc + tap(o1e[:, :wo, :], 1, 0)      # (1, 0)
    acc = acc + tap(o1o_ref[0], 1, 1)          # (1, 1)
    acc = acc + tap(o1e[:, 1:, :], 1, 2)       # (1, 2)
    acc = acc + tap(e2e[:, :wo, :], 2, 0)      # (2, 0)
    acc = acc + tap(e2o_ref[0], 2, 1)          # (2, 1)
    acc = acc + tap(e2e[:, 1:, :], 2, 2)       # (2, 2)

    out_ref[0] = acc.reshape(tho, wo, coutp).astype(out_ref.dtype)


# ------------------------------ JAX wrapper -------------------------------- #
_PAD_MODE = {"zeros": "constant", "reflect": "reflect",
             "replicate": "edge", "circular": "wrap"}


def _pick_row_tile(ho, wo, cin, coutp, elem_bytes):
    """Largest divisor of `ho` whose (double-buffered) blocks fit a VMEM budget."""
    budget = 24 * 1024 * 1024                 # in/out pipeline buffers only

    def block_bytes(t):
        inp = 6 * t * (wo + 1) * cin * elem_bytes * 2   # 6 slabs, 2 buffers each
        out = t * wo * coutp * 4 * 2                    # f32 output, 2 buffers
        return inp + out

    best = 1
    for t in range(1, ho + 1):
        if ho % t == 0 and t * wo <= 4096 and block_bytes(t) <= budget:
            best = t
    return best


def downsample_forward(x_nchw, weight, *, padding_mode="zeros",
                       compute_dtype=jnp.bfloat16):
    """Equivalent of DownSample.forward (Conv2d 3x3, stride=2, pad=1, no bias).

    x_nchw:  [N, Cin, H, W]          weight: [Cout, Cin, 3, 3] (PyTorch layout)
    returns: [N, Cout, ceil(H/2), ceil(W/2)]  float32
    """
    n, cin, h, w = x_nchw.shape
    cout = weight.shape[0]
    ho = (h - 1) // 2 + 1
    wo = (w - 1) // 2 + 1
    coutp = ((cout + 127) // 128) * 128       # lane-dense output channels

    # NCHW -> NHWC (channels on the lane dim), spatial padding = 1.
    x = jnp.transpose(x_nchw, (0, 2, 3, 1))
    x_pad = jnp.pad(x, ((0, 0), (1, 1), (1, 1), (0, 0)),
                    mode=_PAD_MODE[padding_mode]).astype(compute_dtype)

    # Stride-2 phase split: output pixel (r, c) reads padded (2r+kh, 2c+kw).
    # Three row phases (kh = 0, 1, 2); even padded columns serve kw = 0 and
    # kw = 2 (shifted by one column inside the kernel), odd columns serve kw = 1.
    def phases(kh):
        rows = x_pad[:, kh:kh + 2 * ho:2]              # (N, Ho, W+2, Cin)
        even = rows[:, :, 0:2 * wo + 1:2]              # (N, Ho, Wo + 1, Cin)
        odd = rows[:, :, 1:2 * wo:2]                   # (N, Ho, Wo,     Cin)
        return even, odd

    e0e, e0o = phases(0)
    o1e, o1o = phases(1)
    e2e, e2o = phases(2)

    # Conv weight -> (kh, kw, Cin, Cout_p), zero-padded on Cout.
    w_taps = jnp.transpose(weight, (2, 3, 1, 0))
    if coutp != cout:
        w_taps = jnp.pad(w_taps, ((0, 0), (0, 0), (0, 0), (0, coutp - cout)))
    w_taps = w_taps.astype(compute_dtype)

    elem_bytes = jnp.dtype(compute_dtype).itemsize
    tho = _pick_row_tile(ho, wo, cin, coutp, elem_bytes)
    grid = (n, ho // tho)

    def idx(nn, tt):
        return (nn, tt, 0, 0)

    def slab_spec(width):
        return pl.BlockSpec((1, tho, width, cin), idx)

    cost = pl.CostEstimate(
        flops=2 * n * ho * wo * 9 * cin * coutp,
        transcendentals=0,
        bytes_accessed=(n * ho * (3 * (wo + 1) + 3 * wo) * cin * elem_bytes
                        + 9 * cin * coutp * elem_bytes
                        + n * ho * wo * coutp * 4),
    )

    out = pl.pallas_call(
        _downsample_kernel,
        out_shape=jax.ShapeDtypeStruct((n, ho, wo, coutp), jnp.float32),
        grid_spec=pltpu.PrefetchScalarGridSpec(
            num_scalar_prefetch=0,
            grid=grid,
            in_specs=[
                slab_spec(wo + 1),                                 # e0e (kh=0, even cols)
                slab_spec(wo),                                     # e0o (kh=0, odd cols)
                slab_spec(wo + 1),                                 # o1e (kh=1, even cols)
                slab_spec(wo),                                     # o1o (kh=1, odd cols)
                slab_spec(wo + 1),                                 # e2e (kh=2, even cols)
                slab_spec(wo),                                     # e2o (kh=2, odd cols)
                pl.BlockSpec((3, 3, cin, coutp),
                             lambda nn, tt: (0, 0, 0, 0)),          # weight (constant)
            ],
            out_specs=pl.BlockSpec((1, tho, wo, coutp), idx),
        ),
        compiler_params=pltpu.CompilerParams(
            dimension_semantics=("parallel", "parallel"),
            vmem_limit_bytes=48 * 1024 * 1024,
        ),
        cost_estimate=cost,
    )(e0e, e0o, o1e, o1o, e2e, e2o, w_taps)

    # Drop the Cout padding, NHWC -> NCHW.
    return jnp.transpose(out[..., :cout], (0, 3, 1, 2))


# --------------------------------- main ------------------------------------ #
if __name__ == "__main__":
    key = jax.random.PRNGKey(0)
    k_x, k_w = jax.random.split(key)

    N, Cin, H, W = 2, 4, 16, 16
    Cout = 8

    x = jax.random.normal(k_x, (N, Cin, H, W), dtype=jnp.float32)
    weight = 0.1 * jax.random.normal(k_w, (Cout, Cin, 3, 3), dtype=jnp.float32)

    y = jax.jit(downsample_forward)(x, weight)
    y = jax.block_until_ready(y)

    # Reference: XLA conv on the same bf16-rounded operands (the kernel computes
    # bf16 x bf16 -> f32 on the MXU).
    xb = x.astype(jnp.bfloat16).astype(jnp.float32)
    wb = weight.astype(jnp.bfloat16).astype(jnp.float32)
    y_ref = jax.lax.conv_general_dilated(
        xb, wb, window_strides=(2, 2), padding=((1, 1), (1, 1)),
        dimension_numbers=("NCHW", "OIHW", "NCHW"))

    assert y.shape == (N, Cout, H // 2, W // 2), y.shape
    max_err = float(jnp.max(jnp.abs(y - y_ref)))
    assert jnp.allclose(y, y_ref, atol=2e-2, rtol=2e-2), max_err

    print("KERNEL_OK")
</pallas_src>

<mosaic_0001>
module attributes {stable_mosaic.version = 11 : i64} {
  func.func @_downsample_kernel(%arg0: i32, %arg1: i32, %arg2: memref<1x8x9x4xbf16, #tpu.memory_space<vmem>>, %arg3: memref<1x8x8x4xbf16, #tpu.memory_space<vmem>>, %arg4: memref<1x8x9x4xbf16, #tpu.memory_space<vmem>>, %arg5: memref<1x8x8x4xbf16, #tpu.memory_space<vmem>>, %arg6: memref<1x8x9x4xbf16, #tpu.memory_space<vmem>>, %arg7: memref<1x8x8x4xbf16, #tpu.memory_space<vmem>>, %arg8: memref<3x3x4x128xbf16, #tpu.memory_space<vmem>>, %arg9: memref<1x8x8x128xf32, #tpu.memory_space<vmem>>) attributes {dimension_semantics = [#tpu.dimension_semantics<parallel>, #tpu.dimension_semantics<parallel>], iteration_bounds = array<i64: 2, 1>, scalar_prefetch = 0 : i64, scratch_operands = 0 : i64, tpu.core_type = #tpu.core_type<tc>, window_params = [{transform_indices = @transform_0, window_bounds = array<i64: 1, 8, 9, 4>}, {transform_indices = @transform_1, window_bounds = array<i64: 1, 8, 8, 4>}, {transform_indices = @transform_2, window_bounds = array<i64: 1, 8, 9, 4>}, {transform_indices = @transform_3, window_bounds = array<i64: 1, 8, 8, 4>}, {transform_indices = @transform_4, window_bounds = array<i64: 1, 8, 9, 4>}, {transform_indices = @transform_5, window_bounds = array<i64: 1, 8, 8, 4>}, {pipeline_mode = #tpu.pipeline_mode<synchronous>, transform_indices = @transform_6, window_bounds = array<i64: 3, 3, 4, 128>}, {transform_indices = @transform_7, window_bounds = array<i64: 1, 8, 8, 128>}]} {
    %c0 = arith.constant 0 : index
    %c0_0 = arith.constant 0 : index
    %c0_1 = arith.constant 0 : index
    %c0_2 = arith.constant 0 : index
    %0 = vector.load %arg2[%c0, %c0_0, %c0_1, %c0_2] : memref<1x8x9x4xbf16, #tpu.memory_space<vmem>>, vector<1x8x9x4xbf16>
    %1 = vector.shape_cast %0 : vector<1x8x9x4xbf16> to vector<8x9x4xbf16>
    %c0_3 = arith.constant 0 : index
    %c0_4 = arith.constant 0 : index
    %c0_5 = arith.constant 0 : index
    %c0_6 = arith.constant 0 : index
    %2 = vector.load %arg4[%c0_3, %c0_4, %c0_5, %c0_6] : memref<1x8x9x4xbf16, #tpu.memory_space<vmem>>, vector<1x8x9x4xbf16>
    %3 = vector.shape_cast %2 : vector<1x8x9x4xbf16> to vector<8x9x4xbf16>
    %c0_7 = arith.constant 0 : index
    %c0_8 = arith.constant 0 : index
    %c0_9 = arith.constant 0 : index
    %c0_10 = arith.constant 0 : index
    %4 = vector.load %arg6[%c0_7, %c0_8, %c0_9, %c0_10] : memref<1x8x9x4xbf16, #tpu.memory_space<vmem>>, vector<1x8x9x4xbf16>
    %5 = vector.shape_cast %4 : vector<1x8x9x4xbf16> to vector<8x9x4xbf16>
    %6 = vector.extract_strided_slice %1 {offsets = [0, 0, 0], sizes = [8, 8, 4], strides = [1, 1, 1]} : vector<8x9x4xbf16> to vector<8x8x4xbf16>
    %7 = vector.shape_cast %6 : vector<8x8x4xbf16> to vector<64x4xbf16>
    %c0_11 = arith.constant 0 : index
    %c0_12 = arith.constant 0 : index
    %c0_13 = arith.constant 0 : index
    %c0_14 = arith.constant 0 : index
    %8 = vector.load %arg8[%c0_11, %c0_12, %c0_13, %c0_14] : memref<3x3x4x128xbf16, #tpu.memory_space<vmem>>, vector<1x1x4x128xbf16>
    %9 = vector.shape_cast %8 : vector<1x1x4x128xbf16> to vector<4x128xbf16>
    %cst = arith.constant dense<0.000000e+00> : vector<64x128xf32>
    %10 = tpu.matmul %7, %9, %cst {dimension_numbers = #tpu.dot_dimension_numbers<[1], [0], [0], [1], [0, 0, 1, 1], [], []>} : vector<64x4xbf16>, vector<4x128xbf16>, vector<64x128xf32> -> vector<64x128xf32>
    %c0_15 = arith.constant 0 : index
    %c0_16 = arith.constant 0 : index
    %c0_17 = arith.constant 0 : index
    %c0_18 = arith.constant 0 : index
    %11 = vector.load %arg3[%c0_15, %c0_16, %c0_17, %c0_18] : memref<1x8x8x4xbf16, #tpu.memory_space<vmem>>, vector<1x8x8x4xbf16>
    %12 = vector.shape_cast %11 : vector<1x8x8x4xbf16> to vector<8x8x4xbf16>
    %13 = vector.shape_cast %12 : vector<8x8x4xbf16> to vector<64x4xbf16>
    %c0_19 = arith.constant 0 : index
    %c1 = arith.constant 1 : index
    %c0_20 = arith.constant 0 : index
    %c0_21 = arith.constant 0 : index
    %14 = vector.load %arg8[%c0_19, %c1, %c0_20, %c0_21] : memref<3x3x4x128xbf16, #tpu.memory_space<vmem>>, vector<1x1x4x128xbf16>
    %15 = vector.shape_cast %14 : vector<1x1x4x128xbf16> to vector<4x128xbf16>
    %cst_22 = arith.constant dense<0.000000e+00> : vector<64x128xf32>
    %16 = tpu.matmul %13, %15, %cst_22 {dimension_numbers = #tpu.dot_dimension_numbers<[1], [0], [0], [1], [0, 0, 1, 1], [], []>} : vector<64x4xbf16>, vector<4x128xbf16>, vector<64x128xf32> -> vector<64x128xf32>
    %17 = arith.addf %10, %16 : vector<64x128xf32>
    %18 = vector.extract_strided_slice %1 {offsets = [0, 1, 0], sizes = [8, 8, 4], strides = [1, 1, 1]} : vector<8x9x4xbf16> to vector<8x8x4xbf16>
    %19 = vector.shape_cast %18 : vector<8x8x4xbf16> to vector<64x4xbf16>
    %c0_23 = arith.constant 0 : index
    %c2 = arith.constant 2 : index
    %c0_24 = arith.constant 0 : index
    %c0_25 = arith.constant 0 : index
    %20 = vector.load %arg8[%c0_23, %c2, %c0_24, %c0_25] : memref<3x3x4x128xbf16, #tpu.memory_space<vmem>>, vector<1x1x4x128xbf16>
    %21 = vector.shape_cast %20 : vector<1x1x4x128xbf16> to vector<4x128xbf16>
    %cst_26 = arith.constant dense<0.000000e+00> : vector<64x128xf32>
    %22 = tpu.matmul %19, %21, %cst_26 {dimension_numbers = #tpu.dot_dimension_numbers<[1], [0], [0], [1], [0, 0, 1, 1], [], []>} : vector<64x4xbf16>, vector<4x128xbf16>, vector<64x128xf32> -> vector<64x128xf32>
    %23 = arith.addf %17, %22 : vector<64x128xf32>
    %24 = vector.extract_strided_slice %3 {offsets = [0, 0, 0], sizes = [8, 8, 4], strides = [1, 1, 1]} : vector<8x9x4xbf16> to vector<8x8x4xbf16>
    %25 = vector.shape_cast %24 : vector<8x8x4xbf16> to vector<64x4xbf16>
    %c1_27 = arith.constant 1 : index
    %c0_28 = arith.constant 0 : index
    %c0_29 = arith.constant 0 : index
    %c0_30 = arith.constant 0 : index
    %26 = vector.load %arg8[%c1_27, %c0_28, %c0_29, %c0_30] : memref<3x3x4x128xbf16, #tpu.memory_space<vmem>>, vector<1x1x4x128xbf16>
    %27 = vector.shape_cast %26 : vector<1x1x4x128xbf16> to vector<4x128xbf16>
    %cst_31 = arith.constant dense<0.000000e+00> : vector<64x128xf32>
    %28 = tpu.matmul %25, %27, %cst_31 {dimension_numbers = #tpu.dot_dimension_numbers<[1], [0], [0], [1], [0, 0, 1, 1], [], []>} : vector<64x4xbf16>, vector<4x128xbf16>, vector<64x128xf32> -> vector<64x128xf32>
    %29 = arith.addf %23, %28 : vector<64x128xf32>
    %c0_32 = arith.constant 0 : index
    %c0_33 = arith.constant 0 : index
    %c0_34 = arith.constant 0 : index
    %c0_35 = arith.constant 0 : index
    %30 = vector.load %arg5[%c0_32, %c0_33, %c0_34, %c0_35] : memref<1x8x8x4xbf16, #tpu.memory_space<vmem>>, vector<1x8x8x4xbf16>
    %31 = vector.shape_cast %30 : vector<1x8x8x4xbf16> to vector<8x8x4xbf16>
    %32 = vector.shape_cast %31 : vector<8x8x4xbf16> to vector<64x4xbf16>
    %c1_36 = arith.constant 1 : index
    %c1_37 = arith.constant 1 : index
    %c0_38 = arith.constant 0 : index
    %c0_39 = arith.constant 0 : index
    %33 = vector.load %arg8[%c1_36, %c1_37, %c0_38, %c0_39] : memref<3x3x4x128xbf16, #tpu.memory_space<vmem>>, vector<1x1x4x128xbf16>
    %34 = vector.shape_cast %33 : vector<1x1x4x128xbf16> to vector<4x128xbf16>
    %cst_40 = arith.constant dense<0.000000e+00> : vector<64x128xf32>
    %35 = tpu.matmul %32, %34, %cst_40 {dimension_numbers = #tpu.dot_dimension_numbers<[1], [0], [0], [1], [0, 0, 1, 1], [], []>} : vector<64x4xbf16>, vector<4x128xbf16>, vector<64x128xf32> -> vector<64x128xf32>
    %36 = arith.addf %29, %35 : vector<64x128xf32>
    %37 = vector.extract_strided_slice %3 {offsets = [0, 1, 0], sizes = [8, 8, 4], strides = [1, 1, 1]} : vector<8x9x4xbf16> to vector<8x8x4xbf16>
    %38 = vector.shape_cast %37 : vector<8x8x4xbf16> to vector<64x4xbf16>
    %c1_41 = arith.constant 1 : index
    %c2_42 = arith.constant 2 : index
    %c0_43 = arith.constant 0 : index
    %c0_44 = arith.constant 0 : index
    %39 = vector.load %arg8[%c1_41, %c2_42, %c0_43, %c0_44] : memref<3x3x4x128xbf16, #tpu.memory_space<vmem>>, vector<1x1x4x128xbf16>
    %40 = vector.shape_cast %39 : vector<1x1x4x128xbf16> to vector<4x128xbf16>
    %cst_45 = arith.constant dense<0.000000e+00> : vector<64x128xf32>
    %41 = tpu.matmul %38, %40, %cst_45 {dimension_numbers = #tpu.dot_dimension_numbers<[1], [0], [0], [1], [0, 0, 1, 1], [], []>} : vector<64x4xbf16>, vector<4x128xbf16>, vector<64x128xf32> -> vector<64x128xf32>
    %42 = arith.addf %36, %41 : vector<64x128xf32>
    %43 = vector.extract_strided_slice %5 {offsets = [0, 0, 0], sizes = [8, 8, 4], strides = [1, 1, 1]} : vector<8x9x4xbf16> to vector<8x8x4xbf16>
    %44 = vector.shape_cast %43 : vector<8x8x4xbf16> to vector<64x4xbf16>
    %c2_46 = arith.constant 2 : index
    %c0_47 = arith.constant 0 : index
    %c0_48 = arith.constant 0 : index
    %c0_49 = arith.constant 0 : index
    %45 = vector.load %arg8[%c2_46, %c0_47, %c0_48, %c0_49] : memref<3x3x4x128xbf16, #tpu.memory_space<vmem>>, vector<1x1x4x128xbf16>
    %46 = vector.shape_cast %45 : vector<1x1x4x128xbf16> to vector<4x128xbf16>
    %cst_50 = arith.constant dense<0.000000e+00> : vector<64x128xf32>
    %47 = tpu.matmul %44, %46, %cst_50 {dimension_numbers = #tpu.dot_dimension_numbers<[1], [0], [0], [1], [0, 0, 1, 1], [], []>} : vector<64x4xbf16>, vector<4x128xbf16>, vector<64x128xf32> -> vector<64x128xf32>
    %48 = arith.addf %42, %47 : vector<64x128xf32>
    %c0_51 = arith.constant 0 : index
    %c0_52 = arith.constant 0 : index
    %c0_53 = arith.constant 0 : index
    %c0_54 = arith.constant 0 : index
    %49 = vector.load %arg7[%c0_51, %c0_52, %c0_53, %c0_54] : memref<1x8x8x4xbf16, #tpu.memory_space<vmem>>, vector<1x8x8x4xbf16>
    %50 = vector.shape_cast %49 : vector<1x8x8x4xbf16> to vector<8x8x4xbf16>
    %51 = vector.shape_cast %50 : vector<8x8x4xbf16> to vector<64x4xbf16>
    %c2_55 = arith.constant 2 : index
    %c1_56 = arith.constant 1 : index
    %c0_57 = arith.constant 0 : index
    %c0_58 = arith.constant 0 : index
    %52 = vector.load %arg8[%c2_55, %c1_56, %c0_57, %c0_58] : memref<3x3x4x128xbf16, #tpu.memory_space<vmem>>, vector<1x1x4x128xbf16>
    %53 = vector.shape_cast %52 : vector<1x1x4x128xbf16> to vector<4x128xbf16>
    %cst_59 = arith.constant dense<0.000000e+00> : vector<64x128xf32>
    %54 = tpu.matmul %51, %53, %cst_59 {dimension_numbers = #tpu.dot_dimension_numbers<[1], [0], [0], [1], [0, 0, 1, 1], [], []>} : vector<64x4xbf16>, vector<4x128xbf16>, vector<64x128xf32> -> vector<64x128xf32>
    %55 = arith.addf %48, %54 : vector<64x128xf32>
    %56 = vector.extract_strided_slice %5 {offsets = [0, 1, 0], sizes = [8, 8, 4], strides = [1, 1, 1]} : vector<8x9x4xbf16> to vector<8x8x4xbf16>
    %57 = vector.shape_cast %56 : vector<8x8x4xbf16> to vector<64x4xbf16>
    %c2_60 = arith.constant 2 : index
    %c2_61 = arith.constant 2 : index
    %c0_62 = arith.constant 0 : index
    %c0_63 = arith.constant 0 : index
    %58 = vector.load %arg8[%c2_60, %c2_61, %c0_62, %c0_63] : memref<3x3x4x128xbf16, #tpu.memory_space<vmem>>, vector<1x1x4x128xbf16>
    %59 = vector.shape_cast %58 : vector<1x1x4x128xbf16> to vector<4x128xbf16>
    %cst_64 = arith.constant dense<0.000000e+00> : vector<64x128xf32>
    %60 = tpu.matmul %57, %59, %cst_64 {dimension_numbers = #tpu.dot_dimension_numbers<[1], [0], [0], [1], [0, 0, 1, 1], [], []>} : vector<64x4xbf16>, vector<4x128xbf16>, vector<64x128xf32> -> vector<64x128xf32>
    %61 = arith.addf %55, %60 : vector<64x128xf32>
    %62 = vector.shape_cast %61 : vector<64x128xf32> to vector<8x8x128xf32>
    %c0_65 = arith.constant 0 : index
    %c0_66 = arith.constant 0 : index
    %c0_67 = arith.constant 0 : index
    %c0_68 = arith.constant 0 : index
    %63 = vector.load %arg9[%c0_65, %c0_66, %c0_67, %c0_68] : memref<1x8x8x128xf32, #tpu.memory_space<vmem>>, vector<1x8x8x128xf32>
    %64 = vector.shape_cast %63 : vector<1x8x8x128xf32> to vector<8x8x128xf32>
    %65 = vector.shape_cast %62 : vector<8x8x128xf32> to vector<1x8x8x128xf32>
    tpu.vector_store %arg9[%c0_65, %c0_66, %c0_67, %c0_68], %65 {strides = array<i32>} : memref<1x8x8x128xf32, #tpu.memory_space<vmem>>, vector<1x8x8x128xf32>,
    return
  }
  func.func @transform_0(%arg0: i32, %arg1: i32) -> (i32, i32, i32, i32) {
    %c0_i32 = arith.constant 0 : i32
    %c0_i32_0 = arith.constant 0 : i32
    %c0_i32_1 = arith.constant 0 : i32
    return %arg0, %arg1, %c0_i32, %c0_i32_0 : i32, i32, i32, i32
  }
  func.func @transform_1(%arg0: i32, %arg1: i32) -> (i32, i32, i32, i32) {
    %c0_i32 = arith.constant 0 : i32
    %c0_i32_0 = arith.constant 0 : i32
    %c0_i32_1 = arith.constant 0 : i32
    return %arg0, %arg1, %c0_i32, %c0_i32_0 : i32, i32, i32, i32
  }
  func.func @transform_2(%arg0: i32, %arg1: i32) -> (i32, i32, i32, i32) {
    %c0_i32 = arith.constant 0 : i32
    %c0_i32_0 = arith.constant 0 : i32
    %c0_i32_1 = arith.constant 0 : i32
    return %arg0, %arg1, %c0_i32, %c0_i32_0 : i32, i32, i32, i32
  }
  func.func @transform_3(%arg0: i32, %arg1: i32) -> (i32, i32, i32, i32) {
    %c0_i32 = arith.constant 0 : i32
    %c0_i32_0 = arith.constant 0 : i32
    %c0_i32_1 = arith.constant 0 : i32
    return %arg0, %arg1, %c0_i32, %c0_i32_0 : i32, i32, i32, i32
  }
  func.func @transform_4(%arg0: i32, %arg1: i32) -> (i32, i32, i32, i32) {
    %c0_i32 = arith.constant 0 : i32
    %c0_i32_0 = arith.constant 0 : i32
    %c0_i32_1 = arith.constant 0 : i32
    return %arg0, %arg1, %c0_i32, %c0_i32_0 : i32, i32, i32, i32
  }
  func.func @transform_5(%arg0: i32, %arg1: i32) -> (i32, i32, i32, i32) {
    %c0_i32 = arith.constant 0 : i32
    %c0_i32_0 = arith.constant 0 : i32
    %c0_i32_1 = arith.constant 0 : i32
    return %arg0, %arg1, %c0_i32, %c0_i32_0 : i32, i32, i32, i32
  }
  func.func @transform_6(%arg0: i32, %arg1: i32) -> (i32, i32, i32, i32) {
    %c0_i32 = arith.constant 0 : i32
    %c0_i32_0 = arith.constant 0 : i32
    %c0_i32_1 = arith.constant 0 : i32
    %c0_i32_2 = arith.constant 0 : i32
    %c0_i32_3 = arith.constant 0 : i32
    return %c0_i32, %c0_i32_0, %c0_i32_1, %c0_i32_2 : i32, i32, i32, i32
  }
  func.func @transform_7(%arg0: i32, %arg1: i32) -> (i32, i32, i32, i32) {
    %c0_i32 = arith.constant 0 : i32
    %c0_i32_0 = arith.constant 0 : i32
    %c0_i32_1 = arith.constant 0 : i32
    return %arg0, %arg1, %c0_i32, %c0_i32_0 : i32, i32, i32, i32
  }
}

</mosaic_0001>

<llo_original>
// kernel: downsample_forward.1
$region0: #{downsample_forward.1}
  #allocation0 [shape = 'u32[]', space=smem, size = 0x4, offset = 0x4, fixed_abs, tag = 'smem constant byte address 0x4 - core index']
  #allocation1 [shape = 'u32[144,128]{1,0:T(1,128)}', space=vmem, size = 0x12000, scoped, tag = 'internal scratch']
  %s0 = inlined_call_operand.vmem [shape: bf16[2,8,9,4], index: 0, kind: input, shape index: {}]
  %s1 = inlined_call_operand.vmem [shape: bf16[2,8,8,4], index: 1, kind: input, shape index: {}]
  %s2 = inlined_call_operand.vmem [shape: bf16[2,8,9,4], index: 2, kind: input, shape index: {}]
  %s3 = inlined_call_operand.vmem [shape: bf16[2,8,8,4], index: 3, kind: input, shape index: {}]
  %s4 = inlined_call_operand.vmem [shape: bf16[2,8,9,4], index: 4, kind: input, shape index: {}]
  %s5 = inlined_call_operand.vmem [shape: bf16[2,8,8,4], index: 5, kind: input, shape index: {}]
  %s6 = inlined_call_operand.vmem [shape: bf16[3,3,4,128], index: 6, kind: input, shape index: {}]
  %s7 = inlined_call_operand.vmem [shape: f32[2,8,8,128], index: 7, kind: output, shape index: {}]
  %s8 = sld [smem:[#allocation0]]
  $region61: #{downsample_forward.1} parent=0
    _
  %s10 = ssub.s32 1, %s8
  %s11 = scalar_select 0, %s10, %s8
  loop: start=0, step=1, limit=4
  $region2: #{downsample_forward.1} parent=0 // loop_pre_header
    _
  $region3: #{downsample_forward.1} parent=0 // loop_header
    %s13 = sphi 0, %s17
    %p14 = scmp.ge.s32.totalorder %s13, 4
    %s20 = sphi 0, %s32
    %s21 = sphi 0, %s28
    %s22 = sphi 0, %s20
    %s23 = sphi 0, %s21
    %s24 = sphi 0, %s22
    %s25 = sphi 0, %s23
    %s37 = sphi 0, %s39
    %s40 = sphi 0, %s37
    %s41 = sphi 0, %s40
    %s57 = sphi 0, %s41
    %s65 = sphi 0, %s67
    %s68 = sphi 0, %s65
    %s69 = sphi 0, %s68
    %s85 = sphi 0, %s69
    %s93 = sphi 0, %s95
    %s96 = sphi 0, %s93
    %s97 = sphi 0, %s96
    %s113 = sphi 0, %s97
    %s121 = sphi 0, %s123
    %s124 = sphi 0, %s121
    %s125 = sphi 0, %s124
    %s141 = sphi 0, %s125
    %s149 = sphi 0, %s151
    %s152 = sphi 0, %s149
    %s153 = sphi 0, %s152
    %s169 = sphi 0, %s153
    %s177 = sphi 0, %s179
    %s180 = sphi 0, %s177
    %s181 = sphi 0, %s180
    %s197 = sphi 0, %s181
    %s201 = sphi 0, %s201
    %s203 = sphi 0, %s201
    %s204 = sphi 0, %s203
    %s218 = sphi 0, %s204
    %s226 = sphi 0, %s228
    %s229 = sphi 0, %s226
    %s230 = sphi 0, %s229
    %s246 = sphi 0, %s230
  $region4: #{downsample_forward.1} parent=0 // loop_header_branch
    %16 = sbr.rel (%p14) target = $region8
  $region5: #{downsample_forward.1} parent=0 // loop_body
    %s18 = ssub.s32 %s13, 1
    %s19 = ssub.s32 %s13, 2
    %s26 = sadd.s32 1, %s21
    %p27 = scmp.ge.s32.totalorder %s26, 1
    %s28 = scalar_select %p27, 0, %s26
    %s29 = sadd.s32 1, %s20
    %s30 = scalar_select %p27, %s29, %s20
    %p31 = scmp.ge.s32.totalorder %s30, 2
    %s32 = scalar_select %p31, 0, %s30
    %s33 = ssub.s32 %s20, %s32
    %s34 = ssub.s32 %s21, %s28
    %s35 = sor.u32 %s33, %s34
    %p36 = scmp.eq.s32.totalorder %s35, 0
    %s38 = sadd.s32 %s37, 1
    %s39 = scalar_select %p36, %s37, %s38
    %p42 = pneg %p36
    %p43 = scmp.eq.s32.totalorder %s13, 1
    %p44 = por %p42, %p43
    %p45 = scmp.ne.s32.totalorder %s37, %s40
    %p46 = scmp.eq.s32.totalorder %s13, 0
    %p47 = por %p45, %p46
    %p48 = scmp.ne.s32.totalorder %s37, %s40
    %p49 = scmp.eq.s32.totalorder %s18, 1
    %p50 = por %p48, %p49
    %p51 = scmp.ne.s32.totalorder %s40, %s41
    %p52 = scmp.eq.s32.totalorder %s18, 0
    %p53 = por %p51, %p52
    %p54 = scmp.ne.s32.totalorder %s40, %s41
    %p55 = scmp.eq.s32.totalorder %s19, 1
    %p56 = por %p54, %p55
    %p58 = scmp.ne.s32.totalorder %s41, %s57
    %p59 = scmp.eq.s32.totalorder %s19, 0
    %p60 = por %p58, %p59
    %s61 = ssub.s32 %s20, %s32
    %s62 = ssub.s32 %s21, %s28
    %s63 = sor.u32 %s61, %s62
    %p64 = scmp.eq.s32.totalorder %s63, 0
    %s66 = sadd.s32 %s65, 1
    %s67 = scalar_select %p64, %s65, %s66
    %p70 = pneg %p64
    %p71 = scmp.eq.s32.totalorder %s13, 1
    %p72 = por %p70, %p71
    %p73 = scmp.ne.s32.totalorder %s65, %s68
    %p74 = scmp.eq.s32.totalorder %s13, 0
    %p75 = por %p73, %p74
    %p76 = scmp.ne.s32.totalorder %s65, %s68
    %p77 = scmp.eq.s32.totalorder %s18, 1
    %p78 = por %p76, %p77
    %p79 = scmp.ne.s32.totalorder %s68, %s69
    %p80 = scmp.eq.s32.totalorder %s18, 0
    %p81 = por %p79, %p80
    %p82 = scmp.ne.s32.totalorder %s68, %s69
    %p83 = scmp.eq.s32.totalorder %s19, 1
    %p84 = por %p82, %p83
    %p86 = scmp.ne.s32.totalorder %s69, %s85
    %p87 = scmp.eq.s32.totalorder %s19, 0
    %p88 = por %p86, %p87
    %s89 = ssub.s32 %s20, %s32
    %s90 = ssub.s32 %s21, %s28
    %s91 = sor.u32 %s89, %s90
    %p92 = scmp.eq.s32.totalorder %s91, 0
    %s94 = sadd.s32 %s93, 1
    %s95 = scalar_select %p92, %s93, %s94
    %p98 = pneg %p92
    %p99 = scmp.eq.s32.totalorder %s13, 1
    %p100 = por %p98, %p99
    %p101 = scmp.ne.s32.totalorder %s93, %s96
    %p102 = scmp.eq.s32.totalorder %s13, 0
    %p103 = por %p101, %p102
    %p104 = scmp.ne.s32.totalorder %s93, %s96
    %p105 = scmp.eq.s32.totalorder %s18, 1
    %p106 = por %p104, %p105
    %p107 = scmp.ne.s32.totalorder %s96, %s97
    %p108 = scmp.eq.s32.totalorder %s18, 0
    %p109 = por %p107, %p108
    %p110 = scmp.ne.s32.totalorder %s96, %s97
    %p111 = scmp.eq.s32.totalorder %s19, 1
    %p112 = por %p110, %p111
    %p114 = scmp.ne.s32.totalorder %s97, %s113
    %p115 = scmp.eq.s32.totalorder %s19, 0
    %p116 = por %p114, %p115
    %s117 = ssub.s32 %s20, %s32
    %s118 = ssub.s32 %s21, %s28
    %s119 = sor.u32 %s117, %s118
    %p120 = scmp.eq.s32.totalorder %s119, 0
    %s122 = sadd.s32 %s121, 1
    %s123 = scalar_select %p120, %s121, %s122
    %p126 = pneg %p120
    %p127 = scmp.eq.s32.totalorder %s13, 1
    %p128 = por %p126, %p127
    %p129 = scmp.ne.s32.totalorder %s121, %s124
    %p130 = scmp.eq.s32.totalorder %s13, 0
    %p131 = por %p129, %p130
    %p132 = scmp.ne.s32.totalorder %s121, %s124
    %p133 = scmp.eq.s32.totalorder %s18, 1
    %p134 = por %p132, %p133
    %p135 = scmp.ne.s32.totalorder %s124, %s125
    %p136 = scmp.eq.s32.totalorder %s18, 0
    %p137 = por %p135, %p136
    %p138 = scmp.ne.s32.totalorder %s124, %s125
    %p139 = scmp.eq.s32.totalorder %s19, 1
    %p140 = por %p138, %p139
    %p142 = scmp.ne.s32.totalorder %s125, %s141
    %p143 = scmp.eq.s32.totalorder %s19, 0
    %p144 = por %p142, %p143
    %s145 = ssub.s32 %s20, %s32
    %s146 = ssub.s32 %s21, %s28
    %s147 = sor.u32 %s145, %s146
    %p148 = scmp.eq.s32.totalorder %s147, 0
    %s150 = sadd.s32 %s149, 1
    %s151 = scalar_select %p148, %s149, %s150
    %p154 = pneg %p148
    %p155 = scmp.eq.s32.totalorder %s13, 1
    %p156 = por %p154, %p155
    %p157 = scmp.ne.s32.totalorder %s149, %s152
    %p158 = scmp.eq.s32.totalorder %s13, 0
    %p159 = por %p157, %p158
    %p160 = scmp.ne.s32.totalorder %s149, %s152
    %p161 = scmp.eq.s32.totalorder %s18, 1
    %p162 = por %p160, %p161
    %p163 = scmp.ne.s32.totalorder %s152, %s153
    %p164 = scmp.eq.s32.totalorder %s18, 0
    %p165 = por %p163, %p164
    %p166 = scmp.ne.s32.totalorder %s152, %s153
    %p167 = scmp.eq.s32.totalorder %s19, 1
    %p168 = por %p166, %p167
    %p170 = scmp.ne.s32.totalorder %s153, %s169
    %p171 = scmp.eq.s32.totalorder %s19, 0
    %p172 = por %p170, %p171
    %s173 = ssub.s32 %s20, %s32
    %s174 = ssub.s32 %s21, %s28
    %s175 = sor.u32 %s173, %s174
    %p176 = scmp.eq.s32.totalorder %s175, 0
    %s178 = sadd.s32 %s177, 1
    %s179 = scalar_select %p176, %s177, %s178
    %p182 = pneg %p176
    %p183 = scmp.eq.s32.totalorder %s13, 1
    %p184 = por %p182, %p183
    %p185 = scmp.ne.s32.totalorder %s177, %s180
    %p186 = scmp.eq.s32.totalorder %s13, 0
    %p187 = por %p185, %p186
    %p188 = scmp.ne.s32.totalorder %s177, %s180
    %p189 = scmp.eq.s32.totalorder %s18, 1
    %p190 = por %p188, %p189
    %p191 = scmp.ne.s32.totalorder %s180, %s181
    %p192 = scmp.eq.s32.totalorder %s18, 0
    %p193 = por %p191, %p192
    %p194 = scmp.ne.s32.totalorder %s180, %s181
    %p195 = scmp.eq.s32.totalorder %s19, 1
    %p196 = por %p194, %p195
    %p198 = scmp.ne.s32.totalorder %s181, %s197
    %p199 = scmp.eq.s32.totalorder %s19, 0
    %p200 = por %p198, %p199
    %s202 = sadd.s32 %s201, 1
    %p205 = scmp.eq.s32.totalorder %s13, 1
    %p206 = scmp.ne.s32.totalorder %s201, %s203
    %p207 = scmp.eq.s32.totalorder %s13, 0
    %p208 = por %p206, %p207
    %p209 = scmp.ne.s32.totalorder %s201, %s203
    %p210 = scmp.eq.s32.totalorder %s18, 1
    %p211 = por %p209, %p210
    %p212 = scmp.ne.s32.totalorder %s203, %s204
    %p213 = scmp.eq.s32.totalorder %s18, 0
    %p214 = por %p212, %p213
    %p215 = scmp.ne.s32.totalorder %s203, %s204
    %p216 = scmp.eq.s32.totalorder %s19, 1
    %p217 = por %p215, %p216
    %p219 = scmp.ne.s32.totalorder %s204, %s218
    %p220 = scmp.eq.s32.totalorder %s19, 0
    %p221 = por %p219, %p220
    %s222 = ssub.s32 %s20, %s32
    %s223 = ssub.s32 %s21, %s28
    %s224 = sor.u32 %s222, %s223
    %p225 = scmp.eq.s32.totalorder %s224, 0
    %s227 = sadd.s32 %s226, 1
    %s228 = scalar_select %p225, %s226, %s227
    %p231 = pneg %p225
    %p232 = scmp.eq.s32.totalorder %s13, 1
    %p233 = por %p231, %p232
    %p234 = scmp.ne.s32.totalorder %s226, %s229
    %p235 = scmp.eq.s32.totalorder %s13, 0
    %p236 = por %p234, %p235
    %p237 = scmp.ne.s32.totalorder %s226, %s229
    %p238 = scmp.eq.s32.totalorder %s18, 1
    %p239 = por %p237, %p238
    %p240 = scmp.ne.s32.totalorder %s229, %s230
    %p241 = scmp.eq.s32.totalorder %s18, 0
    %p242 = por %p240, %p241
    %p243 = scmp.ne.s32.totalorder %s229, %s230
    %p244 = scmp.eq.s32.totalorder %s19, 1
    %p245 = por %p243, %p244
    %p247 = scmp.ne.s32.totalorder %s230, %s246
    %p248 = scmp.eq.s32.totalorder %s19, 0
    %p249 = por %p247, %p248
    %p250 = scmp.le.s32.totalorder 1, %s13
    %p251 = scmp.lt.s32.totalorder %s13, 3
    %p252 = pnand %p250, %p251
    %p253 = pneg %p252
    // Predicated region
    $region9: #{downsample_forward.1} parent=5 // pred_check
      _
    $region10: #{downsample_forward.1} parent=5 // pred_check_branch
      %255 = sbr.rel (%p252) target = $region12
    $region11: #{downsample_forward.1} parent=5 // pred_region
      %s256 = ssub.s32 %s13, 1
      // Predicated region
      $region13: #{downsample_forward.1} parent=11 // pred_check
        %p257 = pneg %p214
      $region14: #{downsample_forward.1} parent=11 // pred_check_branch
        %259 = sbr.rel (%p257) target = $region16
      $region15: #{downsample_forward.1} parent=11 // pred_region
        _
      $region16: #{downsample_forward.1} parent=11 // pred_fallthru
        _
    $region12: #{downsample_forward.1} parent=5 // pred_fallthru
      _
    %p260 = scmp.lt.s32.totalorder %s13, 2
    // Predicated region
    $region17: #{downsample_forward.1} parent=5 // pred_check
      %p261 = pneg %p260
    $region18: #{downsample_forward.1} parent=5 // pred_check_branch
      %263 = sbr.rel (%p261) target = $region20
    $region19: #{downsample_forward.1} parent=5 // pred_region
      // Predicated region
      $region21: #{downsample_forward.1} parent=19 // pred_check
        %p264 = pneg %p47
      $region22: #{downsample_forward.1} parent=19 // pred_check_branch
        %266 = sbr.rel (%p264) target = $region24
      $region23: #{downsample_forward.1} parent=19 // pred_region
        %s267 = smul.u32 8, %s21
        %p268 = scmp.lt.s32.totalorder %s20, 1
        %s269 = scalar_select %p268, %s20, 1
        %p270 = scmp.lt.s32.totalorder %s267, 7
        %s271 = scalar_select %p270, %s267, 7
        %s272 = smul.addr %s271, 2
        %s273 = smul.addr %s269, 16
        %s274 = sadd.s32 %s272, %s273
        %s275 = smul.addr %s274, 4
        %s276 = scalar_lea.vmem %s0, %s275
        %s277 = smul.u32 8, %s21
      $region24: #{downsample_forward.1} parent=19 // pred_fallthru
        _
      // Predicated region
      $region25: #{downsample_forward.1} parent=19 // pred_check
        %p278 = pneg %p75
      $region26: #{downsample_forward.1} parent=19 // pred_check_branch
        %280 = sbr.rel (%p278) target = $region28
      $region27: #{downsample_forward.1} parent=19 // pred_region
        %s281 = smul.u32 8, %s21
        %p282 = scmp.lt.s32.totalorder %s20, 1
        %s283 = scalar_select %p282, %s20, 1
        %p284 = scmp.lt.s32.totalorder %s281, 7
        %s285 = scalar_select %p284, %s281, 7
        %s286 = smul.addr %s283, 8
        %s287 = sadd.s32 %s285, %s286
        %s288 = smul.addr %s287, 4
        %s289 = scalar_lea.vmem %s1, %s288
        %s290 = smul.u32 8, %s21
      $region28: #{downsample_forward.1} parent=19 // pred_fallthru
        _
      // Predicated region
      $region29: #{downsample_forward.1} parent=19 // pred_check
        %p291 = pneg %p103
      $region30: #{downsample_forward.1} parent=19 // pred_check_branch
        %293 = sbr.rel (%p291) target = $region32
      $region31: #{downsample_forward.1} parent=19 // pred_region
        %s294 = smul.u32 8, %s21
        %p295 = scmp.lt.s32.totalorder %s20, 1
        %s296 = scalar_select %p295, %s20, 1
        %p297 = scmp.lt.s32.totalorder %s294, 7
        %s298 = scalar_select %p297, %s294, 7
        %s299 = smul.addr %s298, 2
        %s300 = smul.addr %s296, 16
        %s301 = sadd.s32 %s299, %s300
        %s302 = smul.addr %s301, 4
        %s303 = scalar_lea.vmem %s2, %s302
        %s304 = smul.u32 8, %s21
      $region32: #{downsample_forward.1} parent=19 // pred_fallthru
        _
      // Predicated region
      $region33: #{downsample_forward.1} parent=19 // pred_check
        %p305 = pneg %p131
      $region34: #{downsample_forward.1} parent=19 // pred_check_branch
        %307 = sbr.rel (%p305) target = $region36
      $region35: #{downsample_forward.1} parent=19 // pred_region
        %s308 = smul.u32 8, %s21
        %p309 = scmp.lt.s32.totalorder %s20, 1
        %s310 = scalar_select %p309, %s20, 1
        %p311 = scmp.lt.s32.totalorder %s308, 7
        %s312 = scalar_select %p311, %s308, 7
        %s313 = smul.addr %s310, 8
        %s314 = sadd.s32 %s312, %s313
        %s315 = smul.addr %s314, 4
        %s316 = scalar_lea.vmem %s3, %s315
        %s317 = smul.u32 8, %s21
      $region36: #{downsample_forward.1} parent=19 // pred_fallthru
        _
      // Predicated region
      $region37: #{downsample_forward.1} parent=19 // pred_check
        %p318 = pneg %p159
      $region38: #{downsample_forward.1} parent=19 // pred_check_branch
        %320 = sbr.rel (%p318) target = $region40
      $region39: #{downsample_forward.1} parent=19 // pred_region
        %s321 = smul.u32 8, %s21
        %p322 = scmp.lt.s32.totalorder %s20, 1
        %s323 = scalar_select %p322, %s20, 1
        %p324 = scmp.lt.s32.totalorder %s321, 7
        %s325 = scalar_select %p324, %s321, 7
        %s326 = smul.addr %s325, 2
        %s327 = smul.addr %s323, 16
        %s328 = sadd.s32 %s326, %s327
        %s329 = smul.addr %s328, 4
        %s330 = scalar_lea.vmem %s4, %s329
        %s331 = smul.u32 8, %s21
      $region40: #{downsample_forward.1} parent=19 // pred_fallthru
        _
      // Predicated region
      $region41: #{downsample_forward.1} parent=19 // pred_check
        %p332 = pneg %p187
      $region42: #{downsample_forward.1} parent=19 // pred_check_branch
        %334 = sbr.rel (%p332) target = $region44
      $region43: #{downsample_forward.1} parent=19 // pred_region
        %s335 = smul.u32 8, %s21
        %p336 = scmp.lt.s32.totalorder %s20, 1
        %s337 = scalar_select %p336, %s20, 1
        %p338 = scmp.lt.s32.totalorder %s335, 7
        %s339 = scalar_select %p338, %s335, 7
        %s340 = smul.addr %s337, 8
        %s341 = sadd.s32 %s339, %s340
        %s342 = smul.addr %s341, 4
        %s343 = scalar_lea.vmem %s5, %s342
        %s344 = smul.u32 8, %s21
      $region44: #{downsample_forward.1} parent=19 // pred_fallthru
        _
    $region20: #{downsample_forward.1} parent=5 // pred_fallthru
      _
    %p345 = scmp.le.s32.totalorder 1, %s13
    %p346 = scmp.lt.s32.totalorder %s13, 3
    %p347 = pnand %p345, %p346
    %p348 = pneg %p347
    // Predicated region
    $region45: #{downsample_forward.1} parent=5 // pred_check
      _
    $region46: #{downsample_forward.1} parent=5 // pred_check_branch
      %350 = sbr.rel (%p347) target = $region48
    $region47: #{downsample_forward.1} parent=5 // pred_region
      %s351 = ssub.s32 %s13, 1
      %s352 = smul.u32 8, %s23
      %p353 = scmp.lt.s32.totalorder %s22, 1
      %s354 = scalar_select %p353, %s22, 1
      %p355 = scmp.lt.s32.totalorder %s352, 7
      %s356 = scalar_select %p355, %s352, 7
      %s357 = smul.addr %s356, 2
      %s358 = smul.addr %s354, 16
      %s359 = sadd.s32 %s357, %s358
      %s360 = smul.addr %s359, 4
      %s361 = scalar_lea.vmem %s0, %s360
      %p362 = pneg %p53
      %p363 = pneg %p50
      %s364 = smul.u32 8, %s23
      %p365 = scmp.lt.s32.totalorder %s22, 1
      %s366 = scalar_select %p365, %s22, 1
      %p367 = scmp.lt.s32.totalorder %s364, 7
      %s368 = scalar_select %p367, %s364, 7
      %s369 = smul.addr %s366, 8
      %s370 = sadd.s32 %s368, %s369
      %s371 = smul.addr %s370, 4
      %s372 = scalar_lea.vmem %s1, %s371
      %p373 = pneg %p81
      %p374 = pneg %p78
      %s375 = smul.u32 8, %s23
      %p376 = scmp.lt.s32.totalorder %s22, 1
      %s377 = scalar_select %p376, %s22, 1
      %p378 = scmp.lt.s32.totalorder %s375, 7
      %s379 = scalar_select %p378, %s375, 7
      %s380 = smul.addr %s379, 2
      %s381 = smul.addr %s377, 16
      %s382 = sadd.s32 %s380, %s381
      %s383 = smul.addr %s382, 4
      %s384 = scalar_lea.vmem %s2, %s383
      %p385 = pneg %p109
      %p386 = pneg %p106
      %s387 = smul.u32 8, %s23
      %p388 = scmp.lt.s32.totalorder %s22, 1
      %s389 = scalar_select %p388, %s22, 1
      %p390 = scmp.lt.s32.totalorder %s387, 7
      %s391 = scalar_select %p390, %s387, 7
      %s392 = smul.addr %s389, 8
      %s393 = sadd.s32 %s391, %s392
      %s394 = smul.addr %s393, 4
      %s395 = scalar_lea.vmem %s3, %s394
      %p396 = pneg %p137
      %p397 = pneg %p134
      %s398 = smul.u32 8, %s23
      %p399 = scmp.lt.s32.totalorder %s22, 1
      %s400 = scalar_select %p399, %s22, 1
      %p401 = scmp.lt.s32.totalorder %s398, 7
      %s402 = scalar_select %p401, %s398, 7
      %s403 = smul.addr %s402, 2
      %s404 = smul.addr %s400, 16
      %s405 = sadd.s32 %s403, %s404
      %s406 = smul.addr %s405, 4
      %s407 = scalar_lea.vmem %s4, %s406
      %p408 = pneg %p165
      %p409 = pneg %p162
      %s410 = smul.u32 8, %s23
      %p411 = scmp.lt.s32.totalorder %s22, 1
      %s412 = scalar_select %p411, %s22, 1
      %p413 = scmp.lt.s32.totalorder %s410, 7
      %s414 = scalar_select %p413, %s410, 7
      %s415 = smul.addr %s412, 8
      %s416 = sadd.s32 %s414, %s415
      %s417 = smul.addr %s416, 4
      %s418 = scalar_lea.vmem %s5, %s417
      %p419 = pneg %p193
      %p420 = pneg %p190
      %p421 = pneg %p214
      %p422 = pneg %p211
      %p423 = pneg %p242
      %p424 = pneg %p239
      %s425 = smul.u32 8, %s23
      %p426 = scmp.lt.s32.totalorder %s22, 1
      %s427 = scalar_select %p426, %s22, 1
      %p428 = scmp.lt.s32.totalorder %s425, 7
      %s429 = scalar_select %p428, %s425, 7
      %s430 = smul.addr %s427, 8
      %s431 = sadd.s32 %s429, %s430
      %s432 = smul.addr %s431, 8
      %s433 = scalar_lea.vmem %s7, %s432
      %s434 = smul.u32 8, %s23
      %p435 = scmp.lt.s32.totalorder %s22, 1
      %s436 = scalar_select %p435, %s22, 1
      %p437 = scmp.lt.s32.totalorder %s434, 7
      %s438 = scalar_select %p437, %s434, 7
      %s439 = smul.addr %s438, 2
      %s440 = smul.addr %s436, 16
      %s441 = sadd.s32 %s439, %s440
      %s442 = smul.addr %s441, 4
      %s443 = scalar_lea.vmem %s0, %s442
      %s444 = smul.u32 8, %s23
      %s445 = smul.u32 8, %s23
      %p446 = scmp.lt.s32.totalorder %s22, 1
      %s447 = scalar_select %p446, %s22, 1
      %p448 = scmp.lt.s32.totalorder %s445, 7
      %s449 = scalar_select %p448, %s445, 7
      %s450 = smul.addr %s447, 8
      %s451 = sadd.s32 %s449, %s450
      %s452 = smul.addr %s451, 4
      %s453 = scalar_lea.vmem %s1, %s452
      %s454 = smul.u32 8, %s23
      %s455 = smul.u32 8, %s23
      %p456 = scmp.lt.s32.totalorder %s22, 1
      %s457 = scalar_select %p456, %s22, 1
      %p458 = scmp.lt.s32.totalorder %s455, 7
      %s459 = scalar_select %p458, %s455, 7
      %s460 = smul.addr %s459, 2
      %s461 = smul.addr %s457, 16
      %s462 = sadd.s32 %s460, %s461
      %s463 = smul.addr %s462, 4
      %s464 = scalar_lea.vmem %s2, %s463
      %s465 = smul.u32 8, %s23
      %s466 = smul.u32 8, %s23
      %p467 = scmp.lt.s32.totalorder %s22, 1
      %s468 = scalar_select %p467, %s22, 1
      %p469 = scmp.lt.s32.totalorder %s466, 7
      %s470 = scalar_select %p469, %s466, 7
      %s471 = smul.addr %s468, 8
      %s472 = sadd.s32 %s470, %s471
      %s473 = smul.addr %s472, 4
      %s474 = scalar_lea.vmem %s3, %s473
      %s475 = smul.u32 8, %s23
      %s476 = smul.u32 8, %s23
      %p477 = scmp.lt.s32.totalorder %s22, 1
      %s478 = scalar_select %p477, %s22, 1
      %p479 = scmp.lt.s32.totalorder %s476, 7
      %s480 = scalar_select %p479, %s476, 7
      %s481 = smul.addr %s480, 2
      %s482 = smul.addr %s478, 16
      %s483 = sadd.s32 %s481, %s482
      %s484 = smul.addr %s483, 4
      %s485 = scalar_lea.vmem %s4, %s484
      %s486 = smul.u32 8, %s23
      %s487 = smul.u32 8, %s23
      %p488 = scmp.lt.s32.totalorder %s22, 1
      %s489 = scalar_select %p488, %s22, 1
      %p490 = scmp.lt.s32.totalorder %s487, 7
      %s491 = scalar_select %p490, %s487, 7
      %s492 = smul.addr %s489, 8
      %s493 = sadd.s32 %s491, %s492
      %s494 = smul.addr %s493, 4
      %s495 = scalar_lea.vmem %s5, %s494
      %s496 = smul.u32 8, %s23
      %s497 = smul.u32 8, %s23
      %p498 = scmp.lt.s32.totalorder %s22, 1
      %s499 = scalar_select %p498, %s22, 1
      %p500 = scmp.lt.s32.totalorder %s497, 7
      %s501 = scalar_select %p500, %s497, 7
      %s502 = smul.addr %s499, 8
      %s503 = sadd.s32 %s501, %s502
      %s504 = smul.addr %s503, 8
      %s505 = scalar_lea.vmem %s7, %s504
      %s506 = smul.u32 8, %s23
      %v508 = vld [vmem:[%s443] sm:$0xf]
      %v509 = vld [vmem:[%s443 + $0x4] sm:$0x1]
      %v510 = vld [vmem:[%s443 + $0x8] sm:$0xf]
      %v511 = vld [vmem:[%s443 + $0xc] sm:$0x1]
      %v512 = vld [vmem:[%s443 + $0x10] sm:$0xf]
      %v513 = vld [vmem:[%s443 + $0x14] sm:$0x1]
      %v514 = vld [vmem:[%s443 + $0x18] sm:$0xf]
      %v515 = vld [vmem:[%s443 + $0x1c] sm:$0x1]
      %v516 = vld [vmem:[%s443 + $0x20] sm:$0xf]
      %v517 = vld [vmem:[%s443 + $0x24] sm:$0x1]
      %v518 = vld [vmem:[%s443 + $0x28] sm:$0xf]
      %v519 = vld [vmem:[%s443 + $0x2c] sm:$0x1]
      %v520 = vld [vmem:[%s443 + $0x30] sm:$0xf]
      %v521 = vld [vmem:[%s443 + $0x34] sm:$0x1]
      %v522 = vld [vmem:[%s443 + $0x38] sm:$0xf]
      %v523 = vld [vmem:[%s443 + $0x3c] sm:$0x1]
      %v524 = vld [vmem:[%s464] sm:$0xf]
      %v525 = vld [vmem:[%s464 + $0x4] sm:$0x1]
      %v526 = vld [vmem:[%s464 + $0x8] sm:$0xf]
      %v527 = vld [vmem:[%s464 + $0xc] sm:$0x1]
      %v528 = vld [vmem:[%s464 + $0x10] sm:$0xf]
      %v529 = vld [vmem:[%s464 + $0x14] sm:$0x1]
      %v530 = vld [vmem:[%s464 + $0x18] sm:$0xf]
      %v531 = vld [vmem:[%s464 + $0x1c] sm:$0x1]
      %v532 = vld [vmem:[%s464 + $0x20] sm:$0xf]
      %v533 = vld [vmem:[%s464 + $0x24] sm:$0x1]
      %v534 = vld [vmem:[%s464 + $0x28] sm:$0xf]
      %v535 = vld [vmem:[%s464 + $0x2c] sm:$0x1]
      %v536 = vld [vmem:[%s464 + $0x30] sm:$0xf]
      %v537 = vld [vmem:[%s464 + $0x34] sm:$0x1]
      %v538 = vld [vmem:[%s464 + $0x38] sm:$0xf]
      %v539 = vld [vmem:[%s464 + $0x3c] sm:$0x1]
      %v540 = vld [vmem:[%s485] sm:$0xf]
      %v541 = vld [vmem:[%s485 + $0x4] sm:$0x1]
      %v542 = vld [vmem:[%s485 + $0x8] sm:$0xf]
      %v543 = vld [vmem:[%s485 + $0xc] sm:$0x1]
      %v544 = vld [vmem:[%s485 + $0x10] sm:$0xf]
      %v545 = vld [vmem:[%s485 + $0x14] sm:$0x1]
      %v546 = vld [vmem:[%s485 + $0x18] sm:$0xf]
      %v547 = vld [vmem:[%s485 + $0x1c] sm:$0x1]
      %v548 = vld [vmem:[%s485 + $0x20] sm:$0xf]
      %v549 = vld [vmem:[%s485 + $0x24] sm:$0x1]
      %v550 = vld [vmem:[%s485 + $0x28] sm:$0xf]
      %v551 = vld [vmem:[%s485 + $0x2c] sm:$0x1]
      %v552 = vld [vmem:[%s485 + $0x30] sm:$0xf]
      %v553 = vld [vmem:[%s485 + $0x34] sm:$0x1]
      %v554 = vld [vmem:[%s485 + $0x38] sm:$0xf]
      %v555 = vld [vmem:[%s485 + $0x3c] sm:$0x1]
      %v556 = vld [vmem:[%s6] sm:$0x3]
      %v557 = vld [vmem:[%s453] sm:$0xf]
      %v558 = vld [vmem:[%s453 + $0x4] sm:$0xf]
      %v559 = vld [vmem:[%s453 + $0x8] sm:$0xf]
      %v560 = vld [vmem:[%s453 + $0xc] sm:$0xf]
      %v561 = vld [vmem:[%s453 + $0x10] sm:$0xf]
      %v562 = vld [vmem:[%s453 + $0x14] sm:$0xf]
      %v563 = vld [vmem:[%s453 + $0x18] sm:$0xf]
      %v564 = vld [vmem:[%s453 + $0x1c] sm:$0xf]
      %s565 = scalar_lea.vmem %s6, 2
      %v566 = vld [vmem:[%s565] sm:$0x3]
      %v575 = vunpack.c.l.b16 %v557
      %v576 = vunpack.c.l.b16 %v558
      %v577 = vunpack.c.l.b16 %v559
      %v578 = vunpack.c.l.b16 %v560
      %v579 = vunpack.c.l.b16 %v561
      %v580 = vunpack.c.l.b16 %v562
      %v581 = vunpack.c.l.b16 %v563
      %v582 = vunpack.c.l.b16 %v564
      %v583 = vpack.c.b16 %v576, %v575
      %v584 = vpack.c.b16 %v578, %v577
      %v585 = vpack.c.b16 %v580, %v579
      %v586 = vpack.c.b16 %v582, %v581
      %vm587 = vcmask 31744
      %v589 = vsel %vm587, %v583, 0
      %v592 = vsel %vm587, %v584, 0
      %v595 = vsel %vm587, %v585, 0
      %v598 = vsel %vm587, %v586, 0
      %vm600 = vcmask 1041408
      %v602 = vsel %vm600, %v566, 0
      %604 = vmatprep.subr.bf16.mxu0 0
      %605 = vmatpush1.bf16.msra.mxu0 %v602
      %606 = vmatprep.subr.bf16.mxu0 0
      %607 = vmatpush1.bf16.msra.mxu0 0
      %608 = vmatprep.subr.bf16.mxu0 0
      %609 = vmatpush1.bf16.msra.mxu0 0
      %610 = vmatprep.subr.bf16.mxu0 0
      %611 = vmatpush1.bf16.msra.mxu0 0
      %612 = vmatprep.subr.bf16.mxu0 0
      %613 = vmatpush1.bf16.msra.mxu0 0
      %614 = vmatprep.subr.bf16.mxu0 0
      %615 = vmatpush1.bf16.msra.mxu0 0
      %616 = vmatprep.subr.bf16.mxu0 0
      %617 = vmatpush1.bf16.msra.mxu0 0
      %618 = vmatprep.subr.bf16.mxu0 0
      %619 = vmatpush1.bf16.msra.mxu0 0
      %620 = vmatprep.subr.bf16.mxu0 0
      %621 = vmatpush1.bf16.msra.mxu0 0
      %622 = vmatprep.subr.bf16.mxu0 0
      %623 = vmatpush1.bf16.msra.mxu0 0
      %624 = vmatprep.subr.bf16.mxu0 0
      %625 = vmatpush1.bf16.msra.mxu0 0
      %626 = vmatprep.subr.bf16.mxu0 0
      %627 = vmatpush1.bf16.msra.mxu0 0
      %628 = vmatprep.subr.bf16.mxu0 0
      %629 = vmatpush1.bf16.msra.mxu0 0
      %630 = vmatprep.subr.bf16.mxu0 0
      %631 = vmatpush1.bf16.msra.mxu0 0
      %632 = vmatprep.subr.bf16.mxu0 0
      %633 = vmatpush1.bf16.msra.mxu0 0
      %634 = vmatprep.subr.bf16.mxu0 0
      %635 = vmatpush1.bf16.msra.mxu0 0
      %636 = vmatprep.mubr.bf16.mxu0 0
      %637 = vmatmul.mubr.bf16.gmra.mrb[0].mxu0 %v589
      %v638 = vpop.f32.mrb[0].mxu0
      %v639 = vadd.f32 0.0, %v638
      %v640 = vpop.f32.mrb[0].mxu0
      %v641 = vpop.f32.mrb[0].mxu0
      %v642 = vadd.f32 0.0, %v641
      %v643 = vpop.f32.mrb[0].mxu0
      %644 = vmatprep.mubr.bf16.mxu0 0
      %645 = vmatmul.mubr.bf16.gmra.mrb[0].mxu0 %v592
      %v646 = vpop.f32.mrb[0].mxu0
      %v647 = vadd.f32 0.0, %v646
      %v648 = vpop.f32.mrb[0].mxu0
      %v649 = vpop.f32.mrb[0].mxu0
      %v650 = vadd.f32 0.0, %v649
      %v651 = vpop.f32.mrb[0].mxu0
      %652 = vmatprep.mubr.bf16.mxu0 0
      %653 = vmatmul.mubr.bf16.gmra.mrb[0].mxu0 %v595
      %v654 = vpop.f32.mrb[0].mxu0
      %v655 = vadd.f32 0.0, %v654
      %v656 = vpop.f32.mrb[0].mxu0
      %v657 = vpop.f32.mrb[0].mxu0
      %v658 = vadd.f32 0.0, %v657
      %v659 = vpop.f32.mrb[0].mxu0
      %660 = vmatprep.mubr.bf16.mxu0 0
      %661 = vmatmul.mubr.bf16.gmra.mrb[0].mxu0 %v598
      %v662 = vpop.f32.mrb[0].mxu0
      %v663 = vadd.f32 0.0, %v662
      %v664 = vpop.f32.mrb[0].mxu0
      %v665 = vpop.f32.mrb[0].mxu0
      %v666 = vadd.f32 0.0, %v665
      %v667 = vpop.f32.mrb[0].mxu0
      %668 = vdwg.mxu0
      %v677 = vunpack.c.l.b16 %v508
      %v678 = vunpack.c.l.b16 %v510
      %v679 = vunpack.c.l.b16 %v512
      %v680 = vunpack.c.l.b16 %v514
      %v681 = vunpack.c.l.b16 %v516
      %v682 = vunpack.c.l.b16 %v518
      %v683 = vunpack.c.l.b16 %v520
      %v684 = vunpack.c.l.b16 %v522
      %v685 = vpack.c.b16 %v678, %v677
      %v686 = vpack.c.b16 %v680, %v679
      %v687 = vpack.c.b16 %v682, %v681
      %v688 = vpack.c.b16 %v684, %v683
      %v690 = vsel %vm587, %v685, 0
      %v693 = vsel %vm587, %v686, 0
      %v696 = vsel %vm587, %v687, 0
      %v699 = vsel %vm587, %v688, 0
      %v702 = vsel %vm600, %v556, 0
      %704 = vmatprep.subr.bf16.mxu0 0
      %705 = vmatpush1.bf16.msra.mxu0 %v702
      %706 = vmatprep.subr.bf16.mxu0 0
      %707 = vmatpush1.bf16.msra.mxu0 0
      %708 = vmatprep.subr.bf16.mxu0 0
      %709 = vmatpush1.bf16.msra.mxu0 0
      %710 = vmatprep.subr.bf16.mxu0 0
      %711 = vmatpush1.bf16.msra.mxu0 0
      %712 = vmatprep.subr.bf16.mxu0 0
      %713 = vmatpush1.bf16.msra.mxu0 0
      %714 = vmatprep.subr.bf16.mxu0 0
      %715 = vmatpush1.bf16.msra.mxu0 0
      %716 = vmatprep.subr.bf16.mxu0 0
      %717 = vmatpush1.bf16.msra.mxu0 0
      %718 = vmatprep.subr.bf16.mxu0 0
      %719 = vmatpush1.bf16.msra.mxu0 0
      %720 = vmatprep.subr.bf16.mxu0 0
      %721 = vmatpush1.bf16.msra.mxu0 0
      %722 = vmatprep.subr.bf16.mxu0 0
      %723 = vmatpush1.bf16.msra.mxu0 0
      %724 = vmatprep.subr.bf16.mxu0 0
      %725 = vmatpush1.bf16.msra.mxu0 0
      %726 = vmatprep.subr.bf16.mxu0 0
      %727 = vmatpush1.bf16.msra.mxu0 0
      %728 = vmatprep.subr.bf16.mxu0 0
      %729 = vmatpush1.bf16.msra.mxu0 0
      %730 = vmatprep.subr.bf16.mxu0 0
      %731 = vmatpush1.bf16.msra.mxu0 0
      %732 = vmatprep.subr.bf16.mxu0 0
      %733 = vmatpush1.bf16.msra.mxu0 0
      %734 = vmatprep.subr.bf16.mxu0 0
      %735 = vmatpush1.bf16.msra.mxu0 0
      %736 = vmatprep.mubr.bf16.mxu0 0
      %737 = vmatmul.mubr.bf16.gmra.mrb[0].mxu0 %v690
      %v738 = vpop.f32.mrb[0].mxu0
      %v739 = vadd.f32 %v639, %v738
      %v740 = vpop.f32.mrb[0].mxu0
      %v741 = vpop.f32.mrb[0].mxu0
      %v742 = vadd.f32 %v642, %v741
      %v743 = vpop.f32.mrb[0].mxu0
      %744 = vmatprep.mubr.bf16.mxu0 0
      %745 = vmatmul.mubr.bf16.gmra.mrb[0].mxu0 %v693
      %v746 = vpop.f32.mrb[0].mxu0
      %v747 = vadd.f32 %v647, %v746
      %v748 = vpop.f32.mrb[0].mxu0
      %v749 = vpop.f32.mrb[0].mxu0
      %v750 = vadd.f32 %v650, %v749
      %v751 = vpop.f32.mrb[0].mxu0
      %752 = vmatprep.mubr.bf16.mxu0 0
      %753 = vmatmul.mubr.bf16.gmra.mrb[0].mxu0 %v696
      %v754 = vpop.f32.mrb[0].mxu0
      %v755 = vadd.f32 %v655, %v754
      %v756 = vpop.f32.mrb[0].mxu0
      %v757 = vpop.f32.mrb[0].mxu0
      %v758 = vadd.f32 %v658, %v757
      %v759 = vpop.f32.mrb[0].mxu0
      %760 = vmatprep.mubr.bf16.mxu0 0
      %761 = vmatmul.mubr.bf16.gmra.mrb[0].mxu0 %v699
      %v762 = vpop.f32.mrb[0].mxu0
      %v763 = vadd.f32 %v663, %v762
      %v764 = vpop.f32.mrb[0].mxu0
      %v765 = vpop.f32.mrb[0].mxu0
      %v766 = vadd.f32 %v666, %v765
      %v767 = vpop.f32.mrb[0].mxu0
      %768 = vdwg.mxu0
      %vm769 = vsmask.f32 3328
      %vm770 = vsmask.f32 7440
      %vm771 = vmor %vm769, %vm770
      %v773 = vshrl.u32 %v508, 16
      %v775 = vrot.slane %v773, 4
      %v776 = vshll.u32 %v508, 16
      %v778 = vrot.slane %v776, 5
      %v779 = vor.u32 %v775, %v778
      %v780 = vrot.slane %v779, 4
      %v782 = vshll.u32 %v509, 16
      %v784 = vrot.slane %v782, 5
      %v785 = vsel %vm771, %v780, %v784
      %v787 = vshrl.u32 %v510, 16
      %v789 = vrot.slane %v787, 4
      %v790 = vshll.u32 %v510, 16
      %v792 = vrot.slane %v790, 5
      %v793 = vor.u32 %v789, %v792
      %v794 = vrot.slane %v793, 4
      %v796 = vshll.u32 %v511, 16
      %v798 = vrot.slane %v796, 5
      %v799 = vsel %vm771, %v794, %v798
      %v801 = vshrl.u32 %v512, 16
      %v803 = vrot.slane %v801, 4
      %v804 = vshll.u32 %v512, 16
      %v806 = vrot.slane %v804, 5
      %v807 = vor.u32 %v803, %v806
      %v808 = vrot.slane %v807, 4
      %v810 = vshll.u32 %v513, 16
      %v812 = vrot.slane %v810, 5
      %v813 = vsel %vm771, %v808, %v812
      %v815 = vshrl.u32 %v514, 16
      %v817 = vrot.slane %v815, 4
      %v818 = vshll.u32 %v514, 16
      %v820 = vrot.slane %v818, 5
      %v821 = vor.u32 %v817, %v820
      %v822 = vrot.slane %v821, 4
      %v824 = vshll.u32 %v515, 16
      %v826 = vrot.slane %v824, 5
      %v827 = vsel %vm771, %v822, %v826
      %v829 = vshrl.u32 %v516, 16
      %v831 = vrot.slane %v829, 4
      %v832 = vshll.u32 %v516, 16
      %v834 = vrot.slane %v832, 5
      %v835 = vor.u32 %v831, %v834
      %v836 = vrot.slane %v835, 4
      %v838 = vshll.u32 %v517, 16
      %v840 = vrot.slane %v838, 5
      %v841 = vsel %vm771, %v836, %v840
      %v843 = vshrl.u32 %v518, 16
      %v845 = vrot.slane %v843, 4
      %v846 = vshll.u32 %v518, 16
      %v848 = vrot.slane %v846, 5
      %v849 = vor.u32 %v845, %v848
      %v850 = vrot.slane %v849, 4
      %v852 = vshll.u32 %v519, 16
      %v854 = vrot.slane %v852, 5
      %v855 = vsel %vm771, %v850, %v854
      %v857 = vshrl.u32 %v520, 16
      %v859 = vrot.slane %v857, 4
      %v860 = vshll.u32 %v520, 16
      %v862 = vrot.slane %v860, 5
      %v863 = vor.u32 %v859, %v862
      %v864 = vrot.slane %v863, 4
      %v866 = vshll.u32 %v521, 16
      %v868 = vrot.slane %v866, 5
      %v869 = vsel %vm771, %v864, %v868
      %v871 = vshrl.u32 %v522, 16
      %v873 = vrot.slane %v871, 4
      %v874 = vshll.u32 %v522, 16
      %v876 = vrot.slane %v874, 5
      %v877 = vor.u32 %v873, %v876
      %v878 = vrot.slane %v877, 4
      %v880 = vshll.u32 %v523, 16
      %v882 = vrot.slane %v880, 5
      %v883 = vsel %vm771, %v878, %v882
      %s884 = scalar_lea.vmem %s6, 4
      %v885 = vld [vmem:[%s884] sm:$0x3]
      %v886 = vunpack.c.l.b16 %v785
      %v887 = vunpack.c.l.b16 %v799
      %v888 = vunpack.c.l.b16 %v813
      %v889 = vunpack.c.l.b16 %v827
      %v890 = vunpack.c.l.b16 %v841
      %v891 = vunpack.c.l.b16 %v855
      %v892 = vunpack.c.l.b16 %v869
      %v893 = vunpack.c.l.b16 %v883
      %v894 = vpack.c.b16 %v887, %v886
      %v895 = vpack.c.b16 %v889, %v888
      %v896 = vpack.c.b16 %v891, %v890
      %v897 = vpack.c.b16 %v893, %v892
      %v899 = vsel %vm587, %v894, 0
      %v902 = vsel %vm587, %v895, 0
      %v905 = vsel %vm587, %v896, 0
      %v908 = vsel %vm587, %v897, 0
      %v911 = vsel %vm600, %v885, 0
      %913 = vmatprep.subr.bf16.mxu0 0
      %914 = vmatpush1.bf16.msra.mxu0 %v911
      %915 = vmatprep.subr.bf16.mxu0 0
      %916 = vmatpush1.bf16.msra.mxu0 0
      %917 = vmatprep.subr.bf16.mxu0 0
      %918 = vmatpush1.bf16.msra.mxu0 0
      %919 = vmatprep.subr.bf16.mxu0 0
      %920 = vmatpush1.bf16.msra.mxu0 0
      %921 = vmatprep.subr.bf16.mxu0 0
      %922 = vmatpush1.bf16.msra.mxu0 0
      %923 = vmatprep.subr.bf16.mxu0 0
      %924 = vmatpush1.bf16.msra.mxu0 0
      %925 = vmatprep.subr.bf16.mxu0 0
      %926 = vmatpush1.bf16.msra.mxu0 0
      %927 = vmatprep.subr.bf16.mxu0 0
      %928 = vmatpush1.bf16.msra.mxu0 0
      %929 = vmatprep.subr.bf16.mxu0 0
      %930 = vmatpush1.bf16.msra.mxu0 0
      %931 = vmatprep.subr.bf16.mxu0 0
      %932 = vmatpush1.bf16.msra.mxu0 0
      %933 = vmatprep.subr.bf16.mxu0 0
      %934 = vmatpush1.bf16.msra.mxu0 0
      %935 = vmatprep.subr.bf16.mxu0 0
      %936 = vmatpush1.bf16.msra.mxu0 0
      %937 = vmatprep.subr.bf16.mxu0 0
      %938 = vmatpush1.bf16.msra.mxu0 0
      %939 = vmatprep.subr.bf16.mxu0 0
      %940 = vmatpush1.bf16.msra.mxu0 0
      %941 = vmatprep.subr.bf16.mxu0 0
      %942 = vmatpush1.bf16.msra.mxu0 0
      %943 = vmatprep.subr.bf16.mxu0 0
      %944 = vmatpush1.bf16.msra.mxu0 0
      %945 = vmatprep.mubr.bf16.mxu0 0
      %946 = vmatmul.mubr.bf16.gmra.mrb[0].mxu0 %v899
      %v947 = vpop.f32.mrb[0].mxu0
      %v948 = vadd.f32 0.0, %v947
      %v949 = vpop.f32.mrb[0].mxu0
      %v950 = vpop.f32.mrb[0].mxu0
      %v951 = vadd.f32 0.0, %v950
      %v952 = vpop.f32.mrb[0].mxu0
      %953 = vmatprep.mubr.bf16.mxu0 0
      %954 = vmatmul.mubr.bf16.gmra.mrb[0].mxu0 %v902
      %v955 = vpop.f32.mrb[0].mxu0
      %v956 = vadd.f32 0.0, %v955
      %v957 = vpop.f32.mrb[0].mxu0
      %v958 = vpop.f32.mrb[0].mxu0
      %v959 = vadd.f32 0.0, %v958
      %v960 = vpop.f32.mrb[0].mxu0
      %961 = vmatprep.mubr.bf16.mxu0 0
      %962 = vmatmul.mubr.bf16.gmra.mrb[0].mxu0 %v905
      %v963 = vpop.f32.mrb[0].mxu0
      %v964 = vadd.f32 0.0, %v963
      %v965 = vpop.f32.mrb[0].mxu0
      %v966 = vpop.f32.mrb[0].mxu0
      %v967 = vadd.f32 0.0, %v966
      %v968 = vpop.f32.mrb[0].mxu0
      %969 = vmatprep.mubr.bf16.mxu0 0
      %970 = vmatmul.mubr.bf16.gmra.mrb[0].mxu0 %v908
      %v971 = vpop.f32.mrb[0].mxu0
      %v972 = vadd.f32 0.0, %v971
      %v973 = vpop.f32.mrb[0].mxu0
      %v974 = vpop.f32.mrb[0].mxu0
      %v975 = vadd.f32 0.0, %v974
      %v976 = vpop.f32.mrb[0].mxu0
      %977 = vdwg.mxu0
      %v978 = vadd.f32 %v739, %v948
      %v979 = vadd.f32 %v742, %v951
      %v980 = vadd.f32 %v747, %v956
      %v981 = vadd.f32 %v750, %v959
      %v982 = vadd.f32 %v755, %v964
      %v983 = vadd.f32 %v758, %v967
      %v984 = vadd.f32 %v763, %v972
      %v985 = vadd.f32 %v766, %v975
      %s986 = scalar_lea.vmem %s6, 6
      %v987 = vld [vmem:[%s986] sm:$0x3]
      %v996 = vunpack.c.l.b16 %v524
      %v997 = vunpack.c.l.b16 %v526
      %v998 = vunpack.c.l.b16 %v528
      %v999 = vunpack.c.l.b16 %v530
      %v1000 = vunpack.c.l.b16 %v532
      %v1001 = vunpack.c.l.b16 %v534
      %v1002 = vunpack.c.l.b16 %v536
      %v1003 = vunpack.c.l.b16 %v538
      %v1004 = vpack.c.b16 %v997, %v996
      %v1005 = vpack.c.b16 %v999, %v998
      %v1006 = vpack.c.b16 %v1001, %v1000
      %v1007 = vpack.c.b16 %v1003, %v1002
      %v1009 = vsel %vm587, %v1004, 0
      %v1012 = vsel %vm587, %v1005, 0
      %v1015 = vsel %vm587, %v1006, 0
      %v1018 = vsel %vm587, %v1007, 0
      %v1021 = vsel %vm600, %v987, 0
      %1023 = vmatprep.subr.bf16.mxu0 0
      %1024 = vmatpush1.bf16.msra.mxu0 %v1021
      %1025 = vmatprep.subr.bf16.mxu0 0
      %1026 = vmatpush1.bf16.msra.mxu0 0
      %1027 = vmatprep.subr.bf16.mxu0 0
      %1028 = vmatpush1.bf16.msra.mxu0 0
      %1029 = vmatprep.subr.bf16.mxu0 0
      %1030 = vmatpush1.bf16.msra.mxu0 0
      %1031 = vmatprep.subr.bf16.mxu0 0
      %1032 = vmatpush1.bf16.msra.mxu0 0
      %1033 = vmatprep.subr.bf16.mxu0 0
      %1034 = vmatpush1.bf16.msra.mxu0 0
      %1035 = vmatprep.subr.bf16.mxu0 0
      %1036 = vmatpush1.bf16.msra.mxu0 0
      %1037 = vmatprep.subr.bf16.mxu0 0
      %1038 = vmatpush1.bf16.msra.mxu0 0
      %1039 = vmatprep.subr.bf16.mxu0 0
      %1040 = vmatpush1.bf16.msra.mxu0 0
      %1041 = vmatprep.subr.bf16.mxu0 0
      %1042 = vmatpush1.bf16.msra.mxu0 0
      %1043 = vmatprep.subr.bf16.mxu0 0
      %1044 = vmatpush1.bf16.msra.mxu0 0
      %1045 = vmatprep.subr.bf16.mxu0 0
      %1046 = vmatpush1.bf16.msra.mxu0 0
      %1047 = vmatprep.subr.bf16.mxu0 0
      %1048 = vmatpush1.bf16.msra.mxu0 0
      %1049 = vmatprep.subr.bf16.mxu0 0
      %1050 = vmatpush1.bf16.msra.mxu0 0
      %1051 = vmatprep.subr.bf16.mxu0 0
      %1052 = vmatpush1.bf16.msra.mxu0 0
      %1053 = vmatprep.subr.bf16.mxu0 0
      %1054 = vmatpush1.bf16.msra.mxu0 0
      %1055 = vmatprep.mubr.bf16.mxu0 0
      %1056 = vmatmul.mubr.bf16.gmra.mrb[0].mxu0 %v1009
      %v1057 = vpop.f32.mrb[0].mxu0
      %v1058 = vadd.f32 0.0, %v1057
      %v1059 = vpop.f32.mrb[0].mxu0
      %v1060 = vpop.f32.mrb[0].mxu0
      %v1061 = vadd.f32 0.0, %v1060
      %v1062 = vpop.f32.mrb[0].mxu0
      %1063 = vmatprep.mubr.bf16.mxu0 0
      %1064 = vmatmul.mubr.bf16.gmra.mrb[0].mxu0 %v1012
      %v1065 = vpop.f32.mrb[0].mxu0
      %v1066 = vadd.f32 0.0, %v1065
      %v1067 = vpop.f32.mrb[0].mxu0
      %v1068 = vpop.f32.mrb[0].mxu0
      %v1069 = vadd.f32 0.0, %v1068
      %v1070 = vpop.f32.mrb[0].mxu0
      %1071 = vmatprep.mubr.bf16.mxu0 0
      %1072 = vmatmul.mubr.bf16.gmra.mrb[0].mxu0 %v1015
      %v1073 = vpop.f32.mrb[0].mxu0
      %v1074 = vadd.f32 0.0, %v1073
      %v1075 = vpop.f32.mrb[0].mxu0
      %v1076 = vpop.f32.mrb[0].mxu0
      %v1077 = vadd.f32 0.0, %v1076
      %v1078 = vpop.f32.mrb[0].mxu0
      %1079 = vmatprep.mubr.bf16.mxu0 0
      %1080 = vmatmul.mubr.bf16.gmra.mrb[0].mxu0 %v1018
      %v1081 = vpop.f32.mrb[0].mxu0
      %v1082 = vadd.f32 0.0, %v1081
      %v1083 = vpop.f32.mrb[0].mxu0
      %v1084 = vpop.f32.mrb[0].mxu0
      %v1085 = vadd.f32 0.0, %v1084
      %v1086 = vpop.f32.mrb[0].mxu0
      %1087 = vdwg.mxu0
      %v1088 = vadd.f32 %v978, %v1058
      %v1089 = vadd.f32 %v979, %v1061
      %v1090 = vadd.f32 %v980, %v1066
      %v1091 = vadd.f32 %v981, %v1069
      %v1092 = vadd.f32 %v982, %v1074
      %v1093 = vadd.f32 %v983, %v1077
      %v1094 = vadd.f32 %v984, %v1082
      %v1095 = vadd.f32 %v985, %v1085
      %v1096 = vld [vmem:[%s474] sm:$0xf]
      %v1097 = vld [vmem:[%s474 + $0x4] sm:$0xf]
      %v1098 = vld [vmem:[%s474 + $0x8] sm:$0xf]
      %v1099 = vld [vmem:[%s474 + $0xc] sm:$0xf]
      %v1100 = vld [vmem:[%s474 + $0x10] sm:$0xf]
      %v1101 = vld [vmem:[%s474 + $0x14] sm:$0xf]
      %v1102 = vld [vmem:[%s474 + $0x18] sm:$0xf]
      %v1103 = vld [vmem:[%s474 + $0x1c] sm:$0xf]
      %s1104 = scalar_lea.vmem %s6, 8
      %v1105 = vld [vmem:[%s1104] sm:$0x3]
      %v1114 = vunpack.c.l.b16 %v1096
      %v1115 = vunpack.c.l.b16 %v1097
      %v1116 = vunpack.c.l.b16 %v1098
      %v1117 = vunpack.c.l.b16 %v1099
      %v1118 = vunpack.c.l.b16 %v1100
      %v1119 = vunpack.c.l.b16 %v1101
      %v1120 = vunpack.c.l.b16 %v1102
      %v1121 = vunpack.c.l.b16 %v1103
      %v1122 = vpack.c.b16 %v1115, %v1114
      %v1123 = vpack.c.b16 %v1117, %v1116
      %v1124 = vpack.c.b16 %v1119, %v1118
      %v1125 = vpack.c.b16 %v1121, %v1120
      %v1127 = vsel %vm587, %v1122, 0
      %v1130 = vsel %vm587, %v1123, 0
      %v1133 = vsel %vm587, %v1124, 0
      %v1136 = vsel %vm587, %v1125, 0
      %v1139 = vsel %vm600, %v1105, 0
      %1141 = vmatprep.subr.bf16.mxu0 0
      %1142 = vmatpush1.bf16.msra.mxu0 %v1139
      %1143 = vmatprep.subr.bf16.mxu0 0
      %1144 = vmatpush1.bf16.msra.mxu0 0
      %1145 = vmatprep.subr.bf16.mxu0 0
      %1146 = vmatpush1.bf16.msra.mxu0 0
      %1147 = vmatprep.subr.bf16.mxu0 0
      %1148 = vmatpush1.bf16.msra.mxu0 0
      %1149 = vmatprep.subr.bf16.mxu0 0
      %1150 = vmatpush1.bf16.msra.mxu0 0
      %1151 = vmatprep.subr.bf16.mxu0 0
      %1152 = vmatpush1.bf16.msra.mxu0 0
      %1153 = vmatprep.subr.bf16.mxu0 0
      %1154 = vmatpush1.bf16.msra.mxu0 0
      %1155 = vmatprep.subr.bf16.mxu0 0
      %1156 = vmatpush1.bf16.msra.mxu0 0
      %1157 = vmatprep.subr.bf16.mxu0 0
      %1158 = vmatpush1.bf16.msra.mxu0 0
      %1159 = vmatprep.subr.bf16.mxu0 0
      %1160 = vmatpush1.bf16.msra.mxu0 0
      %1161 = vmatprep.subr.bf16.mxu0 0
      %1162 = vmatpush1.bf16.msra.mxu0 0
      %1163 = vmatprep.subr.bf16.mxu0 0
      %1164 = vmatpush1.bf16.msra.mxu0 0
      %1165 = vmatprep.subr.bf16.mxu0 0
      %1166 = vmatpush1.bf16.msra.mxu0 0
      %1167 = vmatprep.subr.bf16.mxu0 0
      %1168 = vmatpush1.bf16.msra.mxu0 0
      %1169 = vmatprep.subr.bf16.mxu0 0
      %1170 = vmatpush1.bf16.msra.mxu0 0
      %1171 = vmatprep.subr.bf16.mxu0 0
      %1172 = vmatpush1.bf16.msra.mxu0 0
      %1173 = vmatprep.mubr.bf16.mxu0 0
      %1174 = vmatmul.mubr.bf16.gmra.mrb[0].mxu0 %v1127
      %v1175 = vpop.f32.mrb[0].mxu0
      %v1176 = vadd.f32 0.0, %v1175
      %v1177 = vpop.f32.mrb[0].mxu0
      %v1178 = vpop.f32.mrb[0].mxu0
      %v1179 = vadd.f32 0.0, %v1178
      %v1180 = vpop.f32.mrb[0].mxu0
      %1181 = vmatprep.mubr.bf16.mxu0 0
      %1182 = vmatmul.mubr.bf16.gmra.mrb[0].mxu0 %v1130
      %v1183 = vpop.f32.mrb[0].mxu0
      %v1184 = vadd.f32 0.0, %v1183
      %v1185 = vpop.f32.mrb[0].mxu0
      %v1186 = vpop.f32.mrb[0].mxu0
      %v1187 = vadd.f32 0.0, %v1186
      %v1188 = vpop.f32.mrb[0].mxu0
      %1189 = vmatprep.mubr.bf16.mxu0 0
      %1190 = vmatmul.mubr.bf16.gmra.mrb[0].mxu0 %v1133
      %v1191 = vpop.f32.mrb[0].mxu0
      %v1192 = vadd.f32 0.0, %v1191
      %v1193 = vpop.f32.mrb[0].mxu0
      %v1194 = vpop.f32.mrb[0].mxu0
      %v1195 = vadd.f32 0.0, %v1194
      %v1196 = vpop.f32.mrb[0].mxu0
      %1197 = vmatprep.mubr.bf16.mxu0 0
      %1198 = vmatmul.mubr.bf16.gmra.mrb[0].mxu0 %v1136
      %v1199 = vpop.f32.mrb[0].mxu0
      %v1200 = vadd.f32 0.0, %v1199
      %v1201 = vpop.f32.mrb[0].mxu0
      %v1202 = vpop.f32.mrb[0].mxu0
      %v1203 = vadd.f32 0.0, %v1202
      %v1204 = vpop.f32.mrb[0].mxu0
      %1205 = vdwg.mxu0
      %v1206 = vadd.f32 %v1088, %v1176
      %v1207 = vadd.f32 %v1089, %v1179
      %v1208 = vadd.f32 %v1090, %v1184
      %v1209 = vadd.f32 %v1091, %v1187
      %v1210 = vadd.f32 %v1092, %v1192
      %v1211 = vadd.f32 %v1093, %v1195
      %v1212 = vadd.f32 %v1094, %v1200
      %v1213 = vadd.f32 %v1095, %v1203
      %v1215 = vshrl.u32 %v524, 16
      %v1217 = vrot.slane %v1215, 4
      %v1218 = vshll.u32 %v524, 16
      %v1220 = vrot.slane %v1218, 5
      %v1221 = vor.u32 %v1217, %v1220
      %v1222 = vrot.slane %v1221, 4
      %v1224 = vshll.u32 %v525, 16
      %v1226 = vrot.slane %v1224, 5
      %v1227 = vsel %vm771, %v1222, %v1226
      %v1229 = vshrl.u32 %v526, 16
      %v1231 = vrot.slane %v1229, 4
      %v1232 = vshll.u32 %v526, 16
      %v1234 = vrot.slane %v1232, 5
      %v1235 = vor.u32 %v1231, %v1234
      %v1236 = vrot.slane %v1235, 4
      %v1238 = vshll.u32 %v527, 16
      %v1240 = vrot.slane %v1238, 5
      %v1241 = vsel %vm771, %v1236, %v1240
      %v1243 = vshrl.u32 %v528, 16
      %v1245 = vrot.slane %v1243, 4
      %v1246 = vshll.u32 %v528, 16
      %v1248 = vrot.slane %v1246, 5
      %v1249 = vor.u32 %v1245, %v1248
      %v1250 = vrot.slane %v1249, 4
      %v1252 = vshll.u32 %v529, 16
      %v1254 = vrot.slane %v1252, 5
      %v1255 = vsel %vm771, %v1250, %v1254
      %v1257 = vshrl.u32 %v530, 16
      %v1259 = vrot.slane %v1257, 4
      %v1260 = vshll.u32 %v530, 16
      %v1262 = vrot.slane %v1260, 5
      %v1263 = vor.u32 %v1259, %v1262
      %v1264 = vrot.slane %v1263, 4
      %v1266 = vshll.u32 %v531, 16
      %v1268 = vrot.slane %v1266, 5
      %v1269 = vsel %vm771, %v1264, %v1268
      %v1271 = vshrl.u32 %v532, 16
      %v1273 = vrot.slane %v1271, 4
      %v1274 = vshll.u32 %v532, 16
      %v1276 = vrot.slane %v1274, 5
      %v1277 = vor.u32 %v1273, %v1276
      %v1278 = vrot.slane %v1277, 4
      %v1280 = vshll.u32 %v533, 16
      %v1282 = vrot.slane %v1280, 5
      %v1283 = vsel %vm771, %v1278, %v1282
      %v1285 = vshrl.u32 %v534, 16
      %v1287 = vrot.slane %v1285, 4
      %v1288 = vshll.u32 %v534, 16
      %v1290 = vrot.slane %v1288, 5
      %v1291 = vor.u32 %v1287, %v1290
      %v1292 = vrot.slane %v1291, 4
      %v1294 = vshll.u32 %v535, 16
      %v1296 = vrot.slane %v1294, 5
      %v1297 = vsel %vm771, %v1292, %v1296
      %v1299 = vshrl.u32 %v536, 16
      %v1301 = vrot.slane %v1299, 4
      %v1302 = vshll.u32 %v536, 16
      %v1304 = vrot.slane %v1302, 5
      %v1305 = vor.u32 %v1301, %v1304
      %v1306 = vrot.slane %v1305, 4
      %v1308 = vshll.u32 %v537, 16
      %v1310 = vrot.slane %v1308, 5
      %v1311 = vsel %vm771, %v1306, %v1310
      %v1313 = vshrl.u32 %v538, 16
      %v1315 = vrot.slane %v1313, 4
      %v1316 = vshll.u32 %v538, 16
      %v1318 = vrot.slane %v1316, 5
      %v1319 = vor.u32 %v1315, %v1318
      %v1320 = vrot.slane %v1319, 4
      %v1322 = vshll.u32 %v539, 16
      %v1324 = vrot.slane %v1322, 5
      %v1325 = vsel %vm771, %v1320, %v1324
      %s1326 = scalar_lea.vmem %s6, 10
      %v1327 = vld [vmem:[%s1326] sm:$0x3]
      %v1328 = vunpack.c.l.b16 %v1227
      %v1329 = vunpack.c.l.b16 %v1241
      %v1330 = vunpack.c.l.b16 %v1255
      %v1331 = vunpack.c.l.b16 %v1269
      %v1332 = vunpack.c.l.b16 %v1283
      %v1333 = vunpack.c.l.b16 %v1297
      %v1334 = vunpack.c.l.b16 %v1311
      %v1335 = vunpack.c.l.b16 %v1325
      %v1336 = vpack.c.b16 %v1329, %v1328
      %v1337 = vpack.c.b16 %v1331, %v1330
      %v1338 = vpack.c.b16 %v1333, %v1332
      %v1339 = vpack.c.b16 %v1335, %v1334
      %v1341 = vsel %vm587, %v1336, 0
      %v1344 = vsel %vm587, %v1337, 0
      %v1347 = vsel %vm587, %v1338, 0
      %v1350 = vsel %vm587, %v1339, 0
      %v1353 = vsel %vm600, %v1327, 0
      %1355 = vmatprep.subr.bf16.mxu0 0
      %1356 = vmatpush1.bf16.msra.mxu0 %v1353
      %1357 = vmatprep.subr.bf16.mxu0 0
      %1358 = vmatpush1.bf16.msra.mxu0 0
      %1359 = vmatprep.subr.bf16.mxu0 0
      %1360 = vmatpush1.bf16.msra.mxu0 0
      %1361 = vmatprep.subr.bf16.mxu0 0
      %1362 = vmatpush1.bf16.msra.mxu0 0
      %1363 = vmatprep.subr.bf16.mxu0 0
      %1364 = vmatpush1.bf16.msra.mxu0 0
      %1365 = vmatprep.subr.bf16.mxu0 0
      %1366 = vmatpush1.bf16.msra.mxu0 0
      %1367 = vmatprep.subr.bf16.mxu0 0
      %1368 = vmatpush1.bf16.msra.mxu0 0
      %1369 = vmatprep.subr.bf16.mxu0 0
      %1370 = vmatpush1.bf16.msra.mxu0 0
      %1371 = vmatprep.subr.bf16.mxu0 0
      %1372 = vmatpush1.bf16.msra.mxu0 0
      %1373 = vmatprep.subr.bf16.mxu0 0
      %1374 = vmatpush1.bf16.msra.mxu0 0
      %1375 = vmatprep.subr.bf16.mxu0 0
      %1376 = vmatpush1.bf16.msra.mxu0 0
      %1377 = vmatprep.subr.bf16.mxu0 0
      %1378 = vmatpush1.bf16.msra.mxu0 0
      %1379 = vmatprep.subr.bf16.mxu0 0
      %1380 = vmatpush1.bf16.msra.mxu0 0
      %1381 = vmatprep.subr.bf16.mxu0 0
      %1382 = vmatpush1.bf16.msra.mxu0 0
      %1383 = vmatprep.subr.bf16.mxu0 0
      %1384 = vmatpush1.bf16.msra.mxu0 0
      %1385 = vmatprep.subr.bf16.mxu0 0
      %1386 = vmatpush1.bf16.msra.mxu0 0
      %1387 = vmatprep.mubr.bf16.mxu0 0
      %1388 = vmatmul.mubr.bf16.gmra.mrb[0].mxu0 %v1341
      %v1389 = vpop.f32.mrb[0].mxu0
      %v1390 = vadd.f32 0.0, %v1389
      %v1391 = vpop.f32.mrb[0].mxu0
      %v1392 = vpop.f32.mrb[0].mxu0
      %v1393 = vadd.f32 0.0, %v1392
      %v1394 = vpop.f32.mrb[0].mxu0
      %1395 = vmatprep.mubr.bf16.mxu0 0
      %1396 = vmatmul.mubr.bf16.gmra.mrb[0].mxu0 %v1344
      %v1397 = vpop.f32.mrb[0].mxu0
      %v1398 = vadd.f32 0.0, %v1397
      %v1399 = vpop.f32.mrb[0].mxu0
      %v1400 = vpop.f32.mrb[0].mxu0
      %v1401 = vadd.f32 0.0, %v1400
      %v1402 = vpop.f32.mrb[0].mxu0
      %1403 = vmatprep.mubr.bf16.mxu0 0
      %1404 = vmatmul.mubr.bf16.gmra.mrb[0].mxu0 %v1347
      %v1405 = vpop.f32.mrb[0].mxu0
      %v1406 = vadd.f32 0.0, %v1405
      %v1407 = vpop.f32.mrb[0].mxu0
      %v1408 = vpop.f32.mrb[0].mxu0
      %v1409 = vadd.f32 0.0, %v1408
      %v1410 = vpop.f32.mrb[0].mxu0
      %1411 = vmatprep.mubr.bf16.mxu0 0
      %1412 = vmatmul.mubr.bf16.gmra.mrb[0].mxu0 %v1350
      %v1413 = vpop.f32.mrb[0].mxu0
      %v1414 = vadd.f32 0.0, %v1413
      %v1415 = vpop.f32.mrb[0].mxu0
      %v1416 = vpop.f32.mrb[0].mxu0
      %v1417 = vadd.f32 0.0, %v1416
      %v1418 = vpop.f32.mrb[0].mxu0
      %1419 = vdwg.mxu0
      %v1420 = vadd.f32 %v1206, %v1390
      %v1421 = vadd.f32 %v1207, %v1393
      %v1422 = vadd.f32 %v1208, %v1398
      %v1423 = vadd.f32 %v1209, %v1401
      %v1424 = vadd.f32 %v1210, %v1406
      %v1425 = vadd.f32 %v1211, %v1409
      %v1426 = vadd.f32 %v1212, %v1414
      %v1427 = vadd.f32 %v1213, %v1417
      %s1428 = scalar_lea.vmem %s6, 12
      %v1429 = vld [vmem:[%s1428] sm:$0x3]
      %v1438 = vunpack.c.l.b16 %v540
      %v1439 = vunpack.c.l.b16 %v542
      %v1440 = vunpack.c.l.b16 %v544
      %v1441 = vunpack.c.l.b16 %v546
      %v1442 = vunpack.c.l.b16 %v548
      %v1443 = vunpack.c.l.b16 %v550
      %v1444 = vunpack.c.l.b16 %v552
      %v1445 = vunpack.c.l.b16 %v554
      %v1446 = vpack.c.b16 %v1439, %v1438
      %v1447 = vpack.c.b16 %v1441, %v1440
      %v1448 = vpack.c.b16 %v1443, %v1442
      %v1449 = vpack.c.b16 %v1445, %v1444
      %v1451 = vsel %vm587, %v1446, 0
      %v1454 = vsel %vm587, %v1447, 0
      %v1457 = vsel %vm587, %v1448, 0
      %v1460 = vsel %vm587, %v1449, 0
      %v1463 = vsel %vm600, %v1429, 0
      %1465 = vmatprep.subr.bf16.mxu0 0
      %1466 = vmatpush1.bf16.msra.mxu0 %v1463
      %1467 = vmatprep.subr.bf16.mxu0 0
      %1468 = vmatpush1.bf16.msra.mxu0 0
      %1469 = vmatprep.subr.bf16.mxu0 0
      %1470 = vmatpush1.bf16.msra.mxu0 0
      %1471 = vmatprep.subr.bf16.mxu0 0
      %1472 = vmatpush1.bf16.msra.mxu0 0
      %1473 = vmatprep.subr.bf16.mxu0 0
      %1474 = vmatpush1.bf16.msra.mxu0 0
      %1475 = vmatprep.subr.bf16.mxu0 0
      %1476 = vmatpush1.bf16.msra.mxu0 0
      %1477 = vmatprep.subr.bf16.mxu0 0
      %1478 = vmatpush1.bf16.msra.mxu0 0
      %1479 = vmatprep.subr.bf16.mxu0 0
      %1480 = vmatpush1.bf16.msra.mxu0 0
      %1481 = vmatprep.subr.bf16.mxu0 0
      %1482 = vmatpush1.bf16.msra.mxu0 0
      %1483 = vmatprep.subr.bf16.mxu0 0
      %1484 = vmatpush1.bf16.msra.mxu0 0
      %1485 = vmatprep.subr.bf16.mxu0 0
      %1486 = vmatpush1.bf16.msra.mxu0 0
      %1487 = vmatprep.subr.bf16.mxu0 0
      %1488 = vmatpush1.bf16.msra.mxu0 0
      %1489 = vmatprep.subr.bf16.mxu0 0
      %1490 = vmatpush1.bf16.msra.mxu0 0
      %1491 = vmatprep.subr.bf16.mxu0 0
      %1492 = vmatpush1.bf16.msra.mxu0 0
      %1493 = vmatprep.subr.bf16.mxu0 0
      %1494 = vmatpush1.bf16.msra.mxu0 0
      %1495 = vmatprep.subr.bf16.mxu0 0
      %1496 = vmatpush1.bf16.msra.mxu0 0
      %1497 = vmatprep.mubr.bf16.mxu0 0
      %1498 = vmatmul.mubr.bf16.gmra.mrb[0].mxu0 %v1451
      %v1499 = vpop.f32.mrb[0].mxu0
      %v1500 = vadd.f32 0.0, %v1499
      %v1501 = vpop.f32.mrb[0].mxu0
      %v1502 = vpop.f32.mrb[0].mxu0
      %v1503 = vadd.f32 0.0, %v1502
      %v1504 = vpop.f32.mrb[0].mxu0
      %1505 = vmatprep.mubr.bf16.mxu0 0
      %1506 = vmatmul.mubr.bf16.gmra.mrb[0].mxu0 %v1454
      %v1507 = vpop.f32.mrb[0].mxu0
      %v1508 = vadd.f32 0.0, %v1507
      %v1509 = vpop.f32.mrb[0].mxu0
      %v1510 = vpop.f32.mrb[0].mxu0
      %v1511 = vadd.f32 0.0, %v1510
      %v1512 = vpop.f32.mrb[0].mxu0
      %1513 = vmatprep.mubr.bf16.mxu0 0
      %1514 = vmatmul.mubr.bf16.gmra.mrb[0].mxu0 %v1457
      %v1515 = vpop.f32.mrb[0].mxu0
      %v1516 = vadd.f32 0.0, %v1515
      %v1517 = vpop.f32.mrb[0].mxu0
      %v1518 = vpop.f32.mrb[0].mxu0
      %v1519 = vadd.f32 0.0, %v1518
      %v1520 = vpop.f32.mrb[0].mxu0
      %1521 = vmatprep.mubr.bf16.mxu0 0
      %1522 = vmatmul.mubr.bf16.gmra.mrb[0].mxu0 %v1460
      %v1523 = vpop.f32.mrb[0].mxu0
      %v1524 = vadd.f32 0.0, %v1523
      %v1525 = vpop.f32.mrb[0].mxu0
      %v1526 = vpop.f32.mrb[0].mxu0
      %v1527 = vadd.f32 0.0, %v1526
      %v1528 = vpop.f32.mrb[0].mxu0
      %1529 = vdwg.mxu0
      %v1530 = vadd.f32 %v1420, %v1500
      %v1531 = vadd.f32 %v1421, %v1503
      %v1532 = vadd.f32 %v1422, %v1508
      %v1533 = vadd.f32 %v1423, %v1511
      %v1534 = vadd.f32 %v1424, %v1516
      %v1535 = vadd.f32 %v1425, %v1519
      %v1536 = vadd.f32 %v1426, %v1524
      %v1537 = vadd.f32 %v1427, %v1527
      %v1538 = vld [vmem:[%s495] sm:$0xf]
      %v1539 = vld [vmem:[%s495 + $0x4] sm:$0xf]
      %v1540 = vld [vmem:[%s495 + $0x8] sm:$0xf]
      %v1541 = vld [vmem:[%s495 + $0xc] sm:$0xf]
      %v1542 = vld [vmem:[%s495 + $0x10] sm:$0xf]
      %v1543 = vld [vmem:[%s495 + $0x14] sm:$0xf]
      %v1544 = vld [vmem:[%s495 + $0x18] sm:$0xf]
      %v1545 = vld [vmem:[%s495 + $0x1c] sm:$0xf]
      %s1546 = scalar_lea.vmem %s6, 14
      %v1547 = vld [vmem:[%s1546] sm:$0x3]
      %v1556 = vunpack.c.l.b16 %v1538
      %v1557 = vunpack.c.l.b16 %v1539
      %v1558 = vunpack.c.l.b16 %v1540
      %v1559 = vunpack.c.l.b16 %v1541
      %v1560 = vunpack.c.l.b16 %v1542
      %v1561 = vunpack.c.l.b16 %v1543
      %v1562 = vunpack.c.l.b16 %v1544
      %v1563 = vunpack.c.l.b16 %v1545
      %v1564 = vpack.c.b16 %v1557, %v1556
      %v1565 = vpack.c.b16 %v1559, %v1558
      %v1566 = vpack.c.b16 %v1561, %v1560
      %v1567 = vpack.c.b16 %v1563, %v1562
      %v1569 = vsel %vm587, %v1564, 0
      %v1572 = vsel %vm587, %v1565, 0
      %v1575 = vsel %vm587, %v1566, 0
      %v1578 = vsel %vm587, %v1567, 0
      %v1581 = vsel %vm600, %v1547, 0
      %1583 = vmatprep.subr.bf16.mxu0 0
      %1584 = vmatpush1.bf16.msra.mxu0 %v1581
      %1585 = vmatprep.subr.bf16.mxu0 0
      %1586 = vmatpush1.bf16.msra.mxu0 0
      %1587 = vmatprep.subr.bf16.mxu0 0
      %1588 = vmatpush1.bf16.msra.mxu0 0
      %1589 = vmatprep.subr.bf16.mxu0 0
      %1590 = vmatpush1.bf16.msra.mxu0 0
      %1591 = vmatprep.subr.bf16.mxu0 0
      %1592 = vmatpush1.bf16.msra.mxu0 0
      %1593 = vmatprep.subr.bf16.mxu0 0
      %1594 = vmatpush1.bf16.msra.mxu0 0
      %1595 = vmatprep.subr.bf16.mxu0 0
      %1596 = vmatpush1.bf16.msra.mxu0 0
      %1597 = vmatprep.subr.bf16.mxu0 0
      %1598 = vmatpush1.bf16.msra.mxu0 0
      %1599 = vmatprep.subr.bf16.mxu0 0
      %1600 = vmatpush1.bf16.msra.mxu0 0
      %1601 = vmatprep.subr.bf16.mxu0 0
      %1602 = vmatpush1.bf16.msra.mxu0 0
      %1603 = vmatprep.subr.bf16.mxu0 0
      %1604 = vmatpush1.bf16.msra.mxu0 0
      %1605 = vmatprep.subr.bf16.mxu0 0
      %1606 = vmatpush1.bf16.msra.mxu0 0
      %1607 = vmatprep.subr.bf16.mxu0 0
      %1608 = vmatpush1.bf16.msra.mxu0 0
      %1609 = vmatprep.subr.bf16.mxu0 0
      %1610 = vmatpush1.bf16.msra.mxu0 0
      %1611 = vmatprep.subr.bf16.mxu0 0
      %1612 = vmatpush1.bf16.msra.mxu0 0
      %1613 = vmatprep.subr.bf16.mxu0 0
      %1614 = vmatpush1.bf16.msra.mxu0 0
      %1615 = vmatprep.mubr.bf16.mxu0 0
      %1616 = vmatmul.mubr.bf16.gmra.mrb[0].mxu0 %v1569
      %v1617 = vpop.f32.mrb[0].mxu0
      %v1618 = vadd.f32 0.0, %v1617
      %v1619 = vpop.f32.mrb[0].mxu0
      %v1620 = vpop.f32.mrb[0].mxu0
      %v1621 = vadd.f32 0.0, %v1620
      %v1622 = vpop.f32.mrb[0].mxu0
      %1623 = vmatprep.mubr.bf16.mxu0 0
      %1624 = vmatmul.mubr.bf16.gmra.mrb[0].mxu0 %v1572
      %v1625 = vpop.f32.mrb[0].mxu0
      %v1626 = vadd.f32 0.0, %v1625
      %v1627 = vpop.f32.mrb[0].mxu0
      %v1628 = vpop.f32.mrb[0].mxu0
      %v1629 = vadd.f32 0.0, %v1628
      %v1630 = vpop.f32.mrb[0].mxu0
      %1631 = vmatprep.mubr.bf16.mxu0 0
      %1632 = vmatmul.mubr.bf16.gmra.mrb[0].mxu0 %v1575
      %v1633 = vpop.f32.mrb[0].mxu0
      %v1634 = vadd.f32 0.0, %v1633
      %v1635 = vpop.f32.mrb[0].mxu0
      %v1636 = vpop.f32.mrb[0].mxu0
      %v1637 = vadd.f32 0.0, %v1636
      %v1638 = vpop.f32.mrb[0].mxu0
      %1639 = vmatprep.mubr.bf16.mxu0 0
      %1640 = vmatmul.mubr.bf16.gmra.mrb[0].mxu0 %v1578
      %v1641 = vpop.f32.mrb[0].mxu0
      %v1642 = vadd.f32 0.0, %v1641
      %v1643 = vpop.f32.mrb[0].mxu0
      %v1644 = vpop.f32.mrb[0].mxu0
      %v1645 = vadd.f32 0.0, %v1644
      %v1646 = vpop.f32.mrb[0].mxu0
      %1647 = vdwg.mxu0
      %v1648 = vadd.f32 %v1530, %v1618
      %v1649 = vadd.f32 %v1531, %v1621
      %v1650 = vadd.f32 %v1532, %v1626
      %v1651 = vadd.f32 %v1533, %v1629
      %v1652 = vadd.f32 %v1534, %v1634
      %v1653 = vadd.f32 %v1535, %v1637
      %v1654 = vadd.f32 %v1536, %v1642
      %v1655 = vadd.f32 %v1537, %v1645
      %v1657 = vshrl.u32 %v540, 16
      %v1659 = vrot.slane %v1657, 4
      %v1660 = vshll.u32 %v540, 16
      %v1662 = vrot.slane %v1660, 5
      %v1663 = vor.u32 %v1659, %v1662
      %v1664 = vrot.slane %v1663, 4
      %v1666 = vshll.u32 %v541, 16
      %v1668 = vrot.slane %v1666, 5
      %v1669 = vsel %vm771, %v1664, %v1668
      %v1671 = vshrl.u32 %v542, 16
      %v1673 = vrot.slane %v1671, 4
      %v1674 = vshll.u32 %v542, 16
      %v1676 = vrot.slane %v1674, 5
      %v1677 = vor.u32 %v1673, %v1676
      %v1678 = vrot.slane %v1677, 4
      %v1680 = vshll.u32 %v543, 16
      %v1682 = vrot.slane %v1680, 5
      %v1683 = vsel %vm771, %v1678, %v1682
      %v1685 = vshrl.u32 %v544, 16
      %v1687 = vrot.slane %v1685, 4
      %v1688 = vshll.u32 %v544, 16
      %v1690 = vrot.slane %v1688, 5
      %v1691 = vor.u32 %v1687, %v1690
      %v1692 = vrot.slane %v1691, 4
      %v1694 = vshll.u32 %v545, 16
      %v1696 = vrot.slane %v1694, 5
      %v1697 = vsel %vm771, %v1692, %v1696
      %v1699 = vshrl.u32 %v546, 16
      %v1701 = vrot.slane %v1699, 4
      %v1702 = vshll.u32 %v546, 16
      %v1704 = vrot.slane %v1702, 5
      %v1705 = vor.u32 %v1701, %v1704
      %v1706 = vrot.slane %v1705, 4
      %v1708 = vshll.u32 %v547, 16
      %v1710 = vrot.slane %v1708, 5
      %v1711 = vsel %vm771, %v1706, %v1710
      %v1713 = vshrl.u32 %v548, 16
      %v1715 = vrot.slane %v1713, 4
      %v1716 = vshll.u32 %v548, 16
      %v1718 = vrot.slane %v1716, 5
      %v1719 = vor.u32 %v1715, %v1718
      %v1720 = vrot.slane %v1719, 4
      %v1722 = vshll.u32 %v549, 16
      %v1724 = vrot.slane %v1722, 5
      %v1725 = vsel %vm771, %v1720, %v1724
      %v1727 = vshrl.u32 %v550, 16
      %v1729 = vrot.slane %v1727, 4
      %v1730 = vshll.u32 %v550, 16
      %v1732 = vrot.slane %v1730, 5
      %v1733 = vor.u32 %v1729, %v1732
      %v1734 = vrot.slane %v1733, 4
      %v1736 = vshll.u32 %v551, 16
      %v1738 = vrot.slane %v1736, 5
      %v1739 = vsel %vm771, %v1734, %v1738
      %v1741 = vshrl.u32 %v552, 16
      %v1743 = vrot.slane %v1741, 4
      %v1744 = vshll.u32 %v552, 16
      %v1746 = vrot.slane %v1744, 5
      %v1747 = vor.u32 %v1743, %v1746
      %v1748 = vrot.slane %v1747, 4
      %v1750 = vshll.u32 %v553, 16
      %v1752 = vrot.slane %v1750, 5
      %v1753 = vsel %vm771, %v1748, %v1752
      %v1755 = vshrl.u32 %v554, 16
      %v1757 = vrot.slane %v1755, 4
      %v1758 = vshll.u32 %v554, 16
      %v1760 = vrot.slane %v1758, 5
      %v1761 = vor.u32 %v1757, %v1760
      %v1762 = vrot.slane %v1761, 4
      %v1764 = vshll.u32 %v555, 16
      %v1766 = vrot.slane %v1764, 5
      %v1767 = vsel %vm771, %v1762, %v1766
      %s1768 = scalar_lea.vmem %s6, 16
      %v1769 = vld [vmem:[%s1768] sm:$0x3]
      %v1770 = vunpack.c.l.b16 %v1669
      %v1771 = vunpack.c.l.b16 %v1683
      %v1772 = vunpack.c.l.b16 %v1697
      %v1773 = vunpack.c.l.b16 %v1711
      %v1774 = vunpack.c.l.b16 %v1725
      %v1775 = vunpack.c.l.b16 %v1739
      %v1776 = vunpack.c.l.b16 %v1753
      %v1777 = vunpack.c.l.b16 %v1767
      %v1778 = vpack.c.b16 %v1771, %v1770
      %v1779 = vpack.c.b16 %v1773, %v1772
      %v1780 = vpack.c.b16 %v1775, %v1774
      %v1781 = vpack.c.b16 %v1777, %v1776
      %v1783 = vsel %vm587, %v1778, 0
      %v1786 = vsel %vm587, %v1779, 0
      %v1789 = vsel %vm587, %v1780, 0
      %v1792 = vsel %vm587, %v1781, 0
      %v1795 = vsel %vm600, %v1769, 0
      %1797 = vmatprep.subr.bf16.mxu0 0
      %1798 = vmatpush1.bf16.msra.mxu0 %v1795
      %1799 = vmatprep.subr.bf16.mxu0 0
      %1800 = vmatpush1.bf16.msra.mxu0 0
      %1801 = vmatprep.subr.bf16.mxu0 0
      %1802 = vmatpush1.bf16.msra.mxu0 0
      %1803 = vmatprep.subr.bf16.mxu0 0
      %1804 = vmatpush1.bf16.msra.mxu0 0
      %1805 = vmatprep.subr.bf16.mxu0 0
      %1806 = vmatpush1.bf16.msra.mxu0 0
      %1807 = vmatprep.subr.bf16.mxu0 0
      %1808 = vmatpush1.bf16.msra.mxu0 0
      %1809 = vmatprep.subr.bf16.mxu0 0
      %1810 = vmatpush1.bf16.msra.mxu0 0
      %1811 = vmatprep.subr.bf16.mxu0 0
      %1812 = vmatpush1.bf16.msra.mxu0 0
      %1813 = vmatprep.subr.bf16.mxu0 0
      %1814 = vmatpush1.bf16.msra.mxu0 0
      %1815 = vmatprep.subr.bf16.mxu0 0
      %1816 = vmatpush1.bf16.msra.mxu0 0
      %1817 = vmatprep.subr.bf16.mxu0 0
      %1818 = vmatpush1.bf16.msra.mxu0 0
      %1819 = vmatprep.subr.bf16.mxu0 0
      %1820 = vmatpush1.bf16.msra.mxu0 0
      %1821 = vmatprep.subr.bf16.mxu0 0
      %1822 = vmatpush1.bf16.msra.mxu0 0
      %1823 = vmatprep.subr.bf16.mxu0 0
      %1824 = vmatpush1.bf16.msra.mxu0 0
      %1825 = vmatprep.subr.bf16.mxu0 0
      %1826 = vmatpush1.bf16.msra.mxu0 0
      %1827 = vmatprep.subr.bf16.mxu0 0
      %1828 = vmatpush1.bf16.msra.mxu0 0
      %1829 = vmatprep.mubr.bf16.mxu0 0
      %1830 = vmatmul.mubr.bf16.gmra.mrb[0].mxu0 %v1783
      %v1831 = vpop.f32.mrb[0].mxu0
      %v1832 = vadd.f32 0.0, %v1831
      %v1833 = vpop.f32.mrb[0].mxu0
      %v1834 = vpop.f32.mrb[0].mxu0
      %v1835 = vadd.f32 0.0, %v1834
      %v1836 = vpop.f32.mrb[0].mxu0
      %1837 = vmatprep.mubr.bf16.mxu0 0
      %1838 = vmatmul.mubr.bf16.gmra.mrb[0].mxu0 %v1786
      %v1839 = vpop.f32.mrb[0].mxu0
      %v1840 = vadd.f32 0.0, %v1839
      %v1841 = vpop.f32.mrb[0].mxu0
      %v1842 = vpop.f32.mrb[0].mxu0
      %v1843 = vadd.f32 0.0, %v1842
      %v1844 = vpop.f32.mrb[0].mxu0
      %1845 = vmatprep.mubr.bf16.mxu0 0
      %1846 = vmatmul.mubr.bf16.gmra.mrb[0].mxu0 %v1789
      %v1847 = vpop.f32.mrb[0].mxu0
      %v1848 = vadd.f32 0.0, %v1847
      %v1849 = vpop.f32.mrb[0].mxu0
      %v1850 = vpop.f32.mrb[0].mxu0
      %v1851 = vadd.f32 0.0, %v1850
      %v1852 = vpop.f32.mrb[0].mxu0
      %1853 = vmatprep.mubr.bf16.mxu0 0
      %1854 = vmatmul.mubr.bf16.gmra.mrb[0].mxu0 %v1792
      %v1855 = vpop.f32.mrb[0].mxu0
      %v1856 = vadd.f32 0.0, %v1855
      %v1857 = vpop.f32.mrb[0].mxu0
      %v1858 = vpop.f32.mrb[0].mxu0
      %v1859 = vadd.f32 0.0, %v1858
      %v1860 = vpop.f32.mrb[0].mxu0
      %1861 = vdwg.mxu0
      %v1862 = vadd.f32 %v1648, %v1832
      %v1863 = vadd.f32 %v1649, %v1835
      %v1864 = vadd.f32 %v1650, %v1840
      %v1865 = vadd.f32 %v1651, %v1843
      %v1866 = vadd.f32 %v1652, %v1848
      %v1867 = vadd.f32 %v1653, %v1851
      %v1868 = vadd.f32 %v1654, %v1856
      %v1869 = vadd.f32 %v1655, %v1859
      %1870 = vst [vmem:[%s505] sm:$0xff] %v1862
      %1871 = vst [vmem:[%s505 + $0x8] sm:$0xff] %v1863
      %1872 = vst [vmem:[%s505 + $0x10] sm:$0xff] %v1864
      %1873 = vst [vmem:[%s505 + $0x18] sm:$0xff] %v1865
      %1874 = vst [vmem:[%s505 + $0x20] sm:$0xff] %v1866
      %1875 = vst [vmem:[%s505 + $0x28] sm:$0xff] %v1867
      %1876 = vst [vmem:[%s505 + $0x30] sm:$0xff] %v1868
      %1877 = vst [vmem:[%s505 + $0x38] sm:$0xff] %v1869
      %s1878 = smul.u32 8, %s23
      %p1879 = scmp.lt.s32.totalorder %s22, 1
      %s1880 = scalar_select %p1879, %s22, 1
      %p1881 = scmp.lt.s32.totalorder %s1878, 7
      %s1882 = scalar_select %p1881, %s1878, 7
      %s1883 = smul.addr %s1880, 8
      %s1884 = sadd.s32 %s1882, %s1883
      %s1885 = smul.addr %s1884, 8
      %s1886 = scalar_lea.vmem %s7, %s1885
      // Predicated region
      $region49: #{downsample_forward.1} parent=47 // pred_check
        %p1887 = pneg %p239
      $region50: #{downsample_forward.1} parent=47 // pred_check_branch
        %1889 = sbr.rel (%p1887) target = $region52
      $region51: #{downsample_forward.1} parent=47 // pred_region
        %s1890 = smul.u32 8, %s23
      $region52: #{downsample_forward.1} parent=47 // pred_fallthru
        _
    $region48: #{downsample_forward.1} parent=5 // pred_fallthru
      _
    %p1891 = scmp.le.s32.totalorder 2, %s13
    // Predicated region
    $region53: #{downsample_forward.1} parent=5 // pred_check
      %p1892 = pneg %p1891
    $region54: #{downsample_forward.1} parent=5 // pred_check_branch
      %1894 = sbr.rel (%p1892) target = $region56
    $region55: #{downsample_forward.1} parent=5 // pred_region
      %s1895 = ssub.s32 %s13, 2
      // Predicated region
      $region57: #{downsample_forward.1} parent=55 // pred_check
        %p1896 = pneg %p245
      $region58: #{downsample_forward.1} parent=55 // pred_check_branch
        %1898 = sbr.rel (%p1896) target = $region60
      $region59: #{downsample_forward.1} parent=55 // pred_region
        %s1899 = smul.u32 8, %s25
        %p1900 = scmp.lt.s32.totalorder %s24, 1
        %s1901 = scalar_select %p1900, %s24, 1
        %p1902 = scmp.lt.s32.totalorder %s1899, 7
        %s1903 = scalar_select %p1902, %s1899, 7
        %s1904 = smul.addr %s1901, 8
        %s1905 = sadd.s32 %s1903, %s1904
        %s1906 = smul.addr %s1905, 8
        %s1907 = scalar_lea.vmem %s7, %s1906
      $region60: #{downsample_forward.1} parent=55 // pred_fallthru
        _
    $region56: #{downsample_forward.1} parent=5 // pred_fallthru
      _
  $region6: #{downsample_forward.1} parent=0 // loop_footer
    %s17 = sadd.s32 1, %s13
  $region7: #{downsample_forward.1} parent=0 // loop_footer_branch
    %12 = sbr.rel target = $region3
  $region8: #{downsample_forward.1} parent=0 // loop_exit
    _

</llo_original>
